<compile_context>
chip_gen: v7x
topology: tpu7x:2x2x1
jax: 0.10.0
libtpu: 0.0.40
codegen_flags: <defaults>
</compile_context>

<pallas_src>
import functools

import jax
import jax.numpy as jnp
from jax.experimental import pallas as pl
from jax.experimental.pallas import tpu as pltpu  # noqa: F401  (kept for TPU-specific tuning)


# ----------------------------- Pallas kernel --------------------------------

def _fused_dcc_kernel(*refs, n_conv, use_l2, use_bn, eps):
    """Entire DCCClassifier forward on a (N, C0*T0) flattened input tile."""
    x_ref = refs[0]
    conv_refs = refs[1:1 + 2 * n_conv]
    (wfc_ref, bfc_ref, gamma_ref, beta_ref, mean_ref, var_ref,
     wcls_ref, bcls_ref, o_ref) = refs[1 + 2 * n_conv:]

    h = x_ref[...]                                    # (N, Cin*Tin) f32, stays on-chip
    # Conv stack: statically unrolled (per-layer shapes differ).
    for i in range(n_conv):
        w = conv_refs[2 * i][...]                     # (Cin*Tin, Cout*Tout) bf16
        b = conv_refs[2 * i + 1][...]                 # (1, Cout*Tout) f32
        acc = jnp.dot(h.astype(w.dtype), w, preferred_element_type=jnp.float32)
        h = jnp.maximum(acc + b, 0.0)                 # bias + ReLU in f32

    # Adaptive avg-pool (folded into the weight) + encoder Linear.
    wfc = wfc_ref[...]
    f = jnp.dot(h.astype(wfc.dtype), wfc,
                preferred_element_type=jnp.float32) + bfc_ref[...]

    if use_l2:
        # F.normalize(feature, p=2, dim=1): x / max(||x||, 1e-12)
        ss = jnp.sum(f * f, axis=1, keepdims=True)
        f = f * jax.lax.rsqrt(jnp.maximum(ss, 1e-24))
    if use_bn:
        # BatchNorm1d in eval mode (running stats).
        f = (f - mean_ref[...]) * jax.lax.rsqrt(var_ref[...] + eps)
        f = f * gamma_ref[...] + beta_ref[...]
    # Dropout(0.5) is identity in eval mode.
    o_ref[...] = (jnp.dot(f, wcls_ref[...], preferred_element_type=jnp.float32)
                  + bcls_ref[...])


# --------------------------- weight preparation ------------------------------

def conv1d_to_dense(w, b, t_in, stride, pad):
    """Fold a PyTorch-layout Conv1d weight (Cout, Cin, K) into a dense matrix.

    Acts on channel-major flattened activations H[n, c*T + t] = x[n, c, t]:
        H_out = H_in @ dense + b_rep
    Padding (zeros) and stride are encoded in the matrix (out-of-range taps are
    simply absent), so the kernel never slices, pads or strides activations.
    """
    c_out, c_in, k = w.shape
    t_out = (t_in + 2 * pad - k) // stride + 1
    to = jnp.arange(t_out)                               # (T_out,)
    kk = jnp.arange(k)                                   # (K,)
    ti = stride * to[:, None] + kk[None, :] - pad        # (T_out, K) input positions
    valid = (ti >= 0) & (ti < t_in)
    ti_c = jnp.clip(ti, 0, t_in - 1)
    ci = jnp.arange(c_in)
    co = jnp.arange(c_out)

    rows = ci[None, :, None, None] * t_in + ti_c[None, None, :, :]    # (1,Cin,To,K)
    rows = jnp.broadcast_to(rows, (c_out, c_in, t_out, k))
    cols = (co[:, None] * t_out + to[None, :])[:, None, :, None]      # (Cout,1,To,1)
    cols = jnp.broadcast_to(cols, (c_out, c_in, t_out, k))
    vals = w[:, :, None, :] * valid[None, None, :, :].astype(w.dtype)  # (Cout,Cin,To,K)

    dense = jnp.zeros((c_in * t_in, c_out * t_out), jnp.float32)
    dense = dense.at[rows.reshape(-1), cols.reshape(-1)].add(vals.reshape(-1))
    b_rep = jnp.repeat(b, t_out)[None, :]                              # (1, Cout*T_out)
    return dense, b_rep, t_out


def prepare_dense_params(params, *, time_len, stride, kernel_size,
                         compute_dtype=jnp.bfloat16):
    """One-time weight transform: conv -> dense, pool folded into encoder FC."""
    prep = {"conv_ws": [], "conv_bs": []}
    t = time_len
    for (w, b), k in zip(params["convs"], kernel_size):
        dense, b_rep, t = conv1d_to_dense(w, b, t, stride, k // 2)
        prep["conv_ws"].append(dense.astype(compute_dtype))
        prep["conv_bs"].append(b_rep)
    # adaptive_avg_pool1d(1) over time folded into the encoder Linear:
    # pooled[n, c] = mean_t H[n, c*T + t]  =>  W_pf[c*T + t, f] = W_fc[c, f] / T
    prep["wfc"] = (jnp.repeat(params["enc_fc_w"], t, axis=0) / t).astype(compute_dtype)
    prep["bfc"] = params["enc_fc_b"][None, :]
    prep["bn_gamma"] = params["bn_gamma"][None, :]
    prep["bn_beta"] = params["bn_beta"][None, :]
    prep["bn_mean"] = params["bn_mean"][None, :]
    prep["bn_var"] = params["bn_var"][None, :]
    prep["wcls"] = params["cls_w"]
    prep["bcls"] = params["cls_b"][None, :]
    return prep


# ------------------------------ forward (fused) ------------------------------

def dcc_classifier_forward(prep, x, *, use_l2_norm=True, use_batch_norm=True):
    """x: (batch, num_epoch, channel, time_len) -> (batch, num_epoch, num_class)."""
    B, E, C, T = x.shape
    N = B * E
    x2d = x.reshape(N, C * T)                          # channel-major flatten, no transpose
    num_class = prep["wcls"].shape[1]
    n_conv = len(prep["conv_ws"])

    args = [x2d]
    for w_d, b_d in zip(prep["conv_ws"], prep["conv_bs"]):
        args += [w_d, b_d]
    args += [prep["wfc"], prep["bfc"],
             prep["bn_gamma"], prep["bn_beta"], prep["bn_mean"], prep["bn_var"],
             prep["wcls"], prep["bcls"]]

    # Advisory cost estimate so XLA schedules the fused custom call sensibly.
    flops = 0
    for w_d in prep["conv_ws"]:
        flops += 2 * N * w_d.shape[0] * w_d.shape[1]
    flops += 2 * N * prep["wfc"].shape[0] * prep["wfc"].shape[1]
    flops += 2 * N * prep["wcls"].shape[0] * prep["wcls"].shape[1]
    bytes_accessed = N * num_class * 4
    for a in args:
        bytes_accessed += int(a.size) * a.dtype.itemsize

    out = pl.pallas_call(
        functools.partial(_fused_dcc_kernel, n_conv=n_conv,
                          use_l2=use_l2_norm, use_bn=use_batch_norm, eps=1e-5),
        out_shape=jax.ShapeDtypeStruct((N, num_class), jnp.float32),
        cost_estimate=pl.CostEstimate(
            flops=flops,
            transcendentals=N + prep["wcls"].shape[0],
            bytes_accessed=bytes_accessed),
    )(*args)
    return out.reshape(B, E, num_class)


# ------------------------------ params & reference ---------------------------

def init_params(key, input_channels, hidden_channels, feature_dim, num_class,
                kernel_size):
    chans = [input_channels, hidden_channels, 2 * hidden_channels,
             4 * hidden_channels, 8 * hidden_channels]
    keys = jax.random.split(key, 2 * len(kernel_size) + 2)
    params = {"convs": []}
    ki = 0
    for l, k in enumerate(kernel_size):
        cin, cout = chans[l], chans[l + 1]
        w = jax.random.normal(keys[ki], (cout, cin, k), jnp.float32)
        w = w / jnp.sqrt(float(cin * k))
        ki += 1
        b = 0.01 * jax.random.normal(keys[ki], (cout,), jnp.float32)
        ki += 1
        params["convs"].append((w, b))
    c_final = chans[len(kernel_size)]
    params["enc_fc_w"] = (jax.random.normal(keys[ki], (c_final, feature_dim), jnp.float32)
                          / jnp.sqrt(float(c_final)))
    params["enc_fc_b"] = jnp.zeros((feature_dim,), jnp.float32)
    # BatchNorm1d(feature_dim) — eval-mode running stats / affine.
    params["bn_gamma"] = jnp.ones((feature_dim,), jnp.float32)
    params["bn_beta"] = jnp.zeros((feature_dim,), jnp.float32)
    params["bn_mean"] = jnp.zeros((feature_dim,), jnp.float32)
    params["bn_var"] = jnp.ones((feature_dim,), jnp.float32)
    params["cls_w"] = (jax.random.normal(keys[ki + 1], (feature_dim, num_class), jnp.float32)
                       / jnp.sqrt(float(feature_dim)))
    params["cls_b"] = jnp.zeros((num_class,), jnp.float32)
    return params


def reference_forward(params, x, *, use_l2_norm, use_batch_norm, stride, kernel_size):
    """Pure-XLA reference (f32) for a correctness cross-check."""
    B, E, C, T = x.shape
    h = x.reshape(B * E, C, T)
    for (w, b), k in zip(params["convs"], kernel_size):
        h = jax.lax.conv_general_dilated(
            h, w, window_strides=(stride,), padding=[(k // 2, k // 2)],
            dimension_numbers=("NCH", "OIH", "NCH"))
        h = jnp.maximum(h + b[None, :, None], 0.0)
    pooled = jnp.mean(h, axis=2)
    f = pooled @ params["enc_fc_w"] + params["enc_fc_b"]
    if use_l2_norm:
        f = f / jnp.maximum(jnp.linalg.norm(f, axis=1, keepdims=True), 1e-12)
    if use_batch_norm:
        f = ((f - params["bn_mean"]) * jax.lax.rsqrt(params["bn_var"] + 1e-5)
             * params["bn_gamma"] + params["bn_beta"])
    out = f @ params["cls_w"] + params["cls_b"]
    return out.reshape(B, E, -1)


# --------------------------------- main --------------------------------------

if __name__ == "__main__":
    batch, num_epoch, channel, time_len = 2, 3, 2, 64
    hidden_channels = 8
    feature_dim = 32
    num_class = 5
    kernel_size = (7, 11, 11, 7)
    stride = 2

    key = jax.random.PRNGKey(0)
    k_param, k_x = jax.random.split(key)
    params = init_params(k_param, channel, hidden_channels, feature_dim,
                         num_class, kernel_size)
    x = jax.random.normal(k_x, (batch, num_epoch, channel, time_len), jnp.float32)

    # One-time weight prep (conv -> dense Toeplitz, pool folded into FC, bf16 cast).
    prep = prepare_dense_params(params, time_len=time_len, stride=stride,
                                kernel_size=kernel_size)

    fwd = jax.jit(functools.partial(dcc_classifier_forward,
                                    use_l2_norm=True, use_batch_norm=True))
    out = fwd(prep, x)
    jax.block_until_ready(out)

    assert out.shape == (batch, num_epoch, num_class), out.shape
    assert bool(jnp.all(jnp.isfinite(out)))

    ref = reference_forward(params, x, use_l2_norm=True, use_batch_norm=True,
                            stride=stride, kernel_size=kernel_size)
    max_err = float(jnp.max(jnp.abs(out - ref)))
    assert bool(jnp.allclose(out, ref, rtol=5e-2, atol=5e-2)), max_err

    print("KERNEL_OK")
</pallas_src>

<mosaic_0001>
module attributes {stable_mosaic.version = 11 : i64} {
  func.func @_fused_dcc_kernel(%arg0: memref<6x128xf32, #tpu.memory_space<vmem>>, %arg1: memref<128x256xbf16, #tpu.memory_space<vmem>>, %arg2: memref<1x256xf32, #tpu.memory_space<vmem>>, %arg3: memref<256x256xbf16, #tpu.memory_space<vmem>>, %arg4: memref<1x256xf32, #tpu.memory_space<vmem>>, %arg5: memref<256x256xbf16, #tpu.memory_space<vmem>>, %arg6: memref<1x256xf32, #tpu.memory_space<vmem>>, %arg7: memref<256x256xbf16, #tpu.memory_space<vmem>>, %arg8: memref<1x256xf32, #tpu.memory_space<vmem>>, %arg9: memref<256x32xbf16, #tpu.memory_space<vmem>>, %arg10: memref<1x32xf32, #tpu.memory_space<vmem>>, %arg11: memref<1x32xf32, #tpu.memory_space<vmem>>, %arg12: memref<1x32xf32, #tpu.memory_space<vmem>>, %arg13: memref<1x32xf32, #tpu.memory_space<vmem>>, %arg14: memref<1x32xf32, #tpu.memory_space<vmem>>, %arg15: memref<32x5xf32, #tpu.memory_space<vmem>>, %arg16: memref<1x5xf32, #tpu.memory_space<vmem>>, %arg17: memref<6x5xf32, #tpu.memory_space<vmem>>) attributes {dimension_semantics = [], scalar_prefetch = 0 : i64, scratch_operands = 0 : i64, tpu.core_type = #tpu.core_type<tc>} {
    %c0 = arith.constant 0 : index
    %c0_0 = arith.constant 0 : index
    %0 = vector.load %arg0[%c0, %c0_0] : memref<6x128xf32, #tpu.memory_space<vmem>>, vector<6x128xf32>
    %c0_1 = arith.constant 0 : index
    %c0_2 = arith.constant 0 : index
    %1 = vector.load %arg1[%c0_1, %c0_2] : memref<128x256xbf16, #tpu.memory_space<vmem>>, vector<128x256xbf16>
    %c0_3 = arith.constant 0 : index
    %c0_4 = arith.constant 0 : index
    %2 = vector.load %arg2[%c0_3, %c0_4] : memref<1x256xf32, #tpu.memory_space<vmem>>, vector<1x256xf32>
    %3 = arith.truncf %0 : vector<6x128xf32> to vector<6x128xbf16>
    %cst = arith.constant dense<0.000000e+00> : vector<6x256xf32>
    %4 = tpu.matmul %3, %1, %cst {dimension_numbers = #tpu.dot_dimension_numbers<[1], [0], [0], [1], [0, 0, 1, 1], [], []>} : vector<6x128xbf16>, vector<128x256xbf16>, vector<6x256xf32> -> vector<6x256xf32>
    %5 = vector.broadcast %2 : vector<1x256xf32> to vector<6x256xf32>
    %6 = arith.addf %4, %5 : vector<6x256xf32>
    %cst_5 = arith.constant 0.000000e+00 : f32
    %7 = vector.broadcast %cst_5 : f32 to vector<6x256xf32>
    %8 = arith.maximumf %6, %7 : vector<6x256xf32>
    %c0_6 = arith.constant 0 : index
    %c0_7 = arith.constant 0 : index
    %9 = vector.load %arg3[%c0_6, %c0_7] : memref<256x256xbf16, #tpu.memory_space<vmem>>, vector<256x256xbf16>
    %c0_8 = arith.constant 0 : index
    %c0_9 = arith.constant 0 : index
    %10 = vector.load %arg4[%c0_8, %c0_9] : memref<1x256xf32, #tpu.memory_space<vmem>>, vector<1x256xf32>
    %11 = arith.truncf %8 : vector<6x256xf32> to vector<6x256xbf16>
    %cst_10 = arith.constant dense<0.000000e+00> : vector<6x256xf32>
    %12 = tpu.matmul %11, %9, %cst_10 {dimension_numbers = #tpu.dot_dimension_numbers<[1], [0], [0], [1], [0, 0, 1, 1], [], []>} : vector<6x256xbf16>, vector<256x256xbf16>, vector<6x256xf32> -> vector<6x256xf32>
    %13 = vector.broadcast %10 : vector<1x256xf32> to vector<6x256xf32>
    %14 = arith.addf %12, %13 : vector<6x256xf32>
    %cst_11 = arith.constant 0.000000e+00 : f32
    %15 = vector.broadcast %cst_11 : f32 to vector<6x256xf32>
    %16 = arith.maximumf %14, %15 : vector<6x256xf32>
    %c0_12 = arith.constant 0 : index
    %c0_13 = arith.constant 0 : index
    %17 = vector.load %arg5[%c0_12, %c0_13] : memref<256x256xbf16, #tpu.memory_space<vmem>>, vector<256x256xbf16>
    %c0_14 = arith.constant 0 : index
    %c0_15 = arith.constant 0 : index
    %18 = vector.load %arg6[%c0_14, %c0_15] : memref<1x256xf32, #tpu.memory_space<vmem>>, vector<1x256xf32>
    %19 = arith.truncf %16 : vector<6x256xf32> to vector<6x256xbf16>
    %cst_16 = arith.constant dense<0.000000e+00> : vector<6x256xf32>
    %20 = tpu.matmul %19, %17, %cst_16 {dimension_numbers = #tpu.dot_dimension_numbers<[1], [0], [0], [1], [0, 0, 1, 1], [], []>} : vector<6x256xbf16>, vector<256x256xbf16>, vector<6x256xf32> -> vector<6x256xf32>
    %21 = vector.broadcast %18 : vector<1x256xf32> to vector<6x256xf32>
    %22 = arith.addf %20, %21 : vector<6x256xf32>
    %cst_17 = arith.constant 0.000000e+00 : f32
    %23 = vector.broadcast %cst_17 : f32 to vector<6x256xf32>
    %24 = arith.maximumf %22, %23 : vector<6x256xf32>
    %c0_18 = arith.constant 0 : index
    %c0_19 = arith.constant 0 : index
    %25 = vector.load %arg7[%c0_18, %c0_19] : memref<256x256xbf16, #tpu.memory_space<vmem>>, vector<256x256xbf16>
    %c0_20 = arith.constant 0 : index
    %c0_21 = arith.constant 0 : index
    %26 = vector.load %arg8[%c0_20, %c0_21] : memref<1x256xf32, #tpu.memory_space<vmem>>, vector<1x256xf32>
    %27 = arith.truncf %24 : vector<6x256xf32> to vector<6x256xbf16>
    %cst_22 = arith.constant dense<0.000000e+00> : vector<6x256xf32>
    %28 = tpu.matmul %27, %25, %cst_22 {dimension_numbers = #tpu.dot_dimension_numbers<[1], [0], [0], [1], [0, 0, 1, 1], [], []>} : vector<6x256xbf16>, vector<256x256xbf16>, vector<6x256xf32> -> vector<6x256xf32>
    %29 = vector.broadcast %26 : vector<1x256xf32> to vector<6x256xf32>
    %30 = arith.addf %28, %29 : vector<6x256xf32>
    %cst_23 = arith.constant 0.000000e+00 : f32
    %31 = vector.broadcast %cst_23 : f32 to vector<6x256xf32>
    %32 = arith.maximumf %30, %31 : vector<6x256xf32>
    %c0_24 = arith.constant 0 : index
    %c0_25 = arith.constant 0 : index
    %33 = vector.load %arg9[%c0_24, %c0_25] : memref<256x32xbf16, #tpu.memory_space<vmem>>, vector<256x32xbf16>
    %34 = arith.truncf %32 : vector<6x256xf32> to vector<6x256xbf16>
    %cst_26 = arith.constant dense<0.000000e+00> : vector<6x32xf32>
    %35 = tpu.matmul %34, %33, %cst_26 {dimension_numbers = #tpu.dot_dimension_numbers<[1], [0], [0], [1], [0, 0, 1, 1], [], []>} : vector<6x256xbf16>, vector<256x32xbf16>, vector<6x32xf32> -> vector<6x32xf32>
    %c0_27 = arith.constant 0 : index
    %c0_28 = arith.constant 0 : index
    %36 = vector.load %arg10[%c0_27, %c0_28] : memref<1x32xf32, #tpu.memory_space<vmem>>, vector<1x32xf32>
    %37 = vector.broadcast %36 : vector<1x32xf32> to vector<6x32xf32>
    %38 = arith.addf %35, %37 : vector<6x32xf32>
    %39 = arith.mulf %38, %38 : vector<6x32xf32>
    %cst_29 = arith.constant dense<0.000000e+00> : vector<6xf32>
    %40 = vector.multi_reduction <add>, %39, %cst_29 [1] : vector<6x32xf32> to vector<6xf32>
    %41 = vector.shape_cast %40 : vector<6xf32> to vector<6x1xf32>
    %cst_30 = arith.constant 1.000000e-24 : f32
    %42 = vector.broadcast %cst_30 : f32 to vector<6x1xf32>
    %43 = arith.maximumf %41, %42 : vector<6x1xf32>
    %44 = math.rsqrt %43 : vector<6x1xf32>
    %45 = vector.broadcast %44 : vector<6x1xf32> to vector<6x32xf32>
    %46 = arith.mulf %38, %45 : vector<6x32xf32>
    %c0_31 = arith.constant 0 : index
    %c0_32 = arith.constant 0 : index
    %47 = vector.load %arg13[%c0_31, %c0_32] : memref<1x32xf32, #tpu.memory_space<vmem>>, vector<1x32xf32>
    %48 = vector.broadcast %47 : vector<1x32xf32> to vector<6x32xf32>
    %49 = arith.subf %46, %48 : vector<6x32xf32>
    %c0_33 = arith.constant 0 : index
    %c0_34 = arith.constant 0 : index
    %50 = vector.load %arg14[%c0_33, %c0_34] : memref<1x32xf32, #tpu.memory_space<vmem>>, vector<1x32xf32>
    %cst_35 = arith.constant 9.99999974E-6 : f32
    %51 = vector.broadcast %cst_35 : f32 to vector<1x32xf32>
    %52 = arith.addf %50, %51 : vector<1x32xf32>
    %53 = math.rsqrt %52 : vector<1x32xf32>
    %54 = vector.broadcast %53 : vector<1x32xf32> to vector<6x32xf32>
    %55 = arith.mulf %49, %54 : vector<6x32xf32>
    %c0_36 = arith.constant 0 : index
    %c0_37 = arith.constant 0 : index
    %56 = vector.load %arg11[%c0_36, %c0_37] : memref<1x32xf32, #tpu.memory_space<vmem>>, vector<1x32xf32>
    %57 = vector.broadcast %56 : vector<1x32xf32> to vector<6x32xf32>
    %58 = arith.mulf %55, %57 : vector<6x32xf32>
    %c0_38 = arith.constant 0 : index
    %c0_39 = arith.constant 0 : index
    %59 = vector.load %arg12[%c0_38, %c0_39] : memref<1x32xf32, #tpu.memory_space<vmem>>, vector<1x32xf32>
    %60 = vector.broadcast %59 : vector<1x32xf32> to vector<6x32xf32>
    %61 = arith.addf %58, %60 : vector<6x32xf32>
    %c0_40 = arith.constant 0 : index
    %c0_41 = arith.constant 0 : index
    %62 = vector.load %arg15[%c0_40, %c0_41] : memref<32x5xf32, #tpu.memory_space<vmem>>, vector<32x5xf32>
    %cst_42 = arith.constant dense<0.000000e+00> : vector<6x5xf32>
    %63 = tpu.matmul %61, %62, %cst_42 {dimension_numbers = #tpu.dot_dimension_numbers<[1], [0], [0], [1], [0, 0, 1, 1], [], []>} : vector<6x32xf32>, vector<32x5xf32>, vector<6x5xf32> -> vector<6x5xf32>
    %c0_43 = arith.constant 0 : index
    %c0_44 = arith.constant 0 : index
    %64 = vector.load %arg16[%c0_43, %c0_44] : memref<1x5xf32, #tpu.memory_space<vmem>>, vector<1x5xf32>
    %65 = vector.broadcast %64 : vector<1x5xf32> to vector<6x5xf32>
    %66 = arith.addf %63, %65 : vector<6x5xf32>
    %c0_45 = arith.constant 0 : index
    %c0_46 = arith.constant 0 : index
    %67 = vector.load %arg17[%c0_45, %c0_46] : memref<6x5xf32, #tpu.memory_space<vmem>>, vector<6x5xf32>
    tpu.vector_store %arg17[%c0_45, %c0_46], %66 {strides = array<i32>} : memref<6x5xf32, #tpu.memory_space<vmem>>, vector<6x5xf32>,
    return
  }
}

</mosaic_0001>

<llo_original>
// kernel: dcc_classifier_forward.1
$region0: #{dcc_classifier_forward.1}
  #allocation0 [shape = 'u32[]', space=smem, size = 0x4, offset = 0x4, fixed_abs, tag = 'smem constant byte address 0x4 - core index']
  #allocation1 [shape = 'u32[144,128]{1,0:T(1,128)}', space=vmem, size = 0x12000, scoped, tag = 'internal scratch']
  %s0 = inlined_call_operand.vmem [shape: f32[6,128], index: 0, kind: input, shape index: {}]
  %s1 = inlined_call_operand.hbm [shape: bf16[128,256], index: 1, kind: input, shape index: {}]
  %s2 = inlined_call_operand.hbm [shape: f32[1,256], index: 2, kind: input, shape index: {}]
  %s3 = inlined_call_operand.vmem [shape: bf16[256,256], index: 3, kind: input, shape index: {}]
  %s4 = inlined_call_operand.hbm [shape: f32[1,256], index: 4, kind: input, shape index: {}]
  %s5 = inlined_call_operand.hbm [shape: bf16[256,256], index: 5, kind: input, shape index: {}]
  %s6 = inlined_call_operand.hbm [shape: f32[1,256], index: 6, kind: input, shape index: {}]
  %s7 = inlined_call_operand.hbm [shape: bf16[256,256], index: 7, kind: input, shape index: {}]
  %s8 = inlined_call_operand.hbm [shape: f32[1,256], index: 8, kind: input, shape index: {}]
  %s9 = inlined_call_operand.vmem [shape: bf16[256,32], index: 9, kind: input, shape index: {}]
  %s10 = inlined_call_operand.vmem [shape: f32[1,32], index: 10, kind: input, shape index: {}]
  %s11 = inlined_call_operand.hbm [shape: f32[1,32], index: 11, kind: input, shape index: {}]
  %s12 = inlined_call_operand.hbm [shape: f32[1,32], index: 12, kind: input, shape index: {}]
  %s13 = inlined_call_operand.hbm [shape: f32[1,32], index: 13, kind: input, shape index: {}]
  %s14 = inlined_call_operand.hbm [shape: f32[1,32], index: 14, kind: input, shape index: {}]
  %s15 = inlined_call_operand.vmem [shape: f32[32,5], index: 15, kind: input, shape index: {}]
  %s16 = inlined_call_operand.hbm [shape: f32[1,5], index: 16, kind: input, shape index: {}]
  %s17 = inlined_call_operand.vmem [shape: f32[6,5], index: 17, kind: output, shape index: {}]
  %s18 = sld [smem:[#allocation0]]
  $region126: #{dcc_classifier_forward.1} parent=0
    _
  %s20 = ssub.s32 1, %s18
  %s21 = scalar_select 0, %s20, %s18
  $region1: #{dcc_classifier_forward.1} parent=0
    #allocation2 [shape = 'u8[65536]{0}', space=vmem, size = 0x10000, scoped, tag = 'input window, operand 1, single buffered']
    #allocation3 [shape = 's32[1]{0}', space=sflag, size = 0x4, scoped, tag = 'scoped memory for dcc_classifier_forward.1']
    #allocation4 [shape = 'u8[1024]{0}', space=vmem, size = 0x400, scoped, tag = 'input window, operand 2, single buffered']
    #allocation5 [shape = 's32[1]{0}', space=sflag, size = 0x4, scoped, tag = 'scoped memory for dcc_classifier_forward.1']
    #allocation6 [shape = 'u8[1024]{0}', space=vmem, size = 0x400, scoped, tag = 'input window, operand 4, single buffered']
    #allocation7 [shape = 'u8[131072]{0}', space=vmem, size = 0x20000, scoped, tag = 'input window, operand 5, single buffered']
    #allocation8 [shape = 's32[1]{0}', space=sflag, size = 0x4, scoped, tag = 'scoped memory for dcc_classifier_forward.1']
    #allocation9 [shape = 'u8[1024]{0}', space=vmem, size = 0x400, scoped, tag = 'input window, operand 6, single buffered']
    #allocation10 [shape = 'u8[131072]{0}', space=vmem, size = 0x20000, scoped, tag = 'input window, operand 7, single buffered']
    #allocation11 [shape = 's32[1]{0}', space=sflag, size = 0x4, scoped, tag = 'scoped memory for dcc_classifier_forward.1']
    #allocation12 [shape = 'u8[1024]{0}', space=vmem, size = 0x400, scoped, tag = 'input window, operand 8, single buffered']
    #allocation13 [shape = 'u8[512]{0}', space=vmem, size = 0x400, scoped, tag = 'input window, operand 11, single buffered']
    #allocation14 [shape = 's32[1]{0}', space=sflag, size = 0x4, scoped, tag = 'scoped memory for dcc_classifier_forward.1']
    #allocation15 [shape = 'u8[512]{0}', space=vmem, size = 0x400, scoped, tag = 'input window, operand 12, single buffered']
    #allocation16 [shape = 'u8[512]{0}', space=vmem, size = 0x400, scoped, tag = 'input window, operand 13, single buffered']
    #allocation17 [shape = 's32[1]{0}', space=sflag, size = 0x4, scoped, tag = 'scoped memory for dcc_classifier_forward.1']
    #allocation18 [shape = 'u8[512]{0}', space=vmem, size = 0x400, scoped, tag = 'input window, operand 14, single buffered']
    #allocation19 [shape = 'u8[512]{0}', space=vmem, size = 0x400, scoped, tag = 'input window, operand 16, single buffered']
    #allocation20 [shape = 's32[1]{0}', space=sflag, size = 0x4, scoped, tag = 'scoped memory for dcc_classifier_forward.1']
    %22 = vsyncpa [#allocation3], 0
    %23 = vsyncpa [#allocation5], 0
    %24 = vsyncpa [#allocation8], 0
    %25 = vsyncpa [#allocation11], 0
    %26 = vsyncpa [#allocation14], 0
    %27 = vsyncpa [#allocation17], 0
    %28 = vsyncpa [#allocation20], 0
    // Predicated region
    $region2: #{dcc_classifier_forward.1} parent=1 // pred_check
      _
    $region3: #{dcc_classifier_forward.1} parent=1 // pred_check_branch
      %30 = sbr.rel (0) target = $region5
    $region4: #{dcc_classifier_forward.1} parent=1 // pred_region
      _
    $region5: #{dcc_classifier_forward.1} parent=1 // pred_fallthru
      _
    // Predicated region
    $region6: #{dcc_classifier_forward.1} parent=1 // pred_check
      _
    $region7: #{dcc_classifier_forward.1} parent=1 // pred_check_branch
      %32 = sbr.rel (0) target = $region9
    $region8: #{dcc_classifier_forward.1} parent=1 // pred_region
      %s34 = ssub.s32 2048, 2048
      %35 = vsyncadd [#allocation3], %s34
      %s36 = sshll.u32 [#allocation2], 4
      %s37 = int_to_ptr.vmem [resolvable:$true] %s36
      %42 = dma.hbm_to_vmem [thread:$0]  %s1, 2048, %s37, [#allocation3], 128, 128, 8
    $region9: #{dcc_classifier_forward.1} parent=1 // pred_fallthru
      _
    // Predicated region
    $region10: #{dcc_classifier_forward.1} parent=1 // pred_check
      _
    $region11: #{dcc_classifier_forward.1} parent=1 // pred_check_branch
      %44 = sbr.rel (0) target = $region13
    $region12: #{dcc_classifier_forward.1} parent=1 // pred_region
      %s46 = ssub.s32 32, 32
      %47 = vsyncadd [#allocation5], %s46
      %s49 = sshll.u32 [#allocation4], 4
      %s50 = int_to_ptr.vmem [resolvable:$true] %s49
      %52 = dma.hbm_to_vmem [thread:$0]  %s2, 32, %s50, [#allocation5]
    $region13: #{dcc_classifier_forward.1} parent=1 // pred_fallthru
      _
    // Predicated region
    $region14: #{dcc_classifier_forward.1} parent=1 // pred_check
      _
    $region15: #{dcc_classifier_forward.1} parent=1 // pred_check_branch
      %54 = sbr.rel (0) target = $region17
    $region16: #{dcc_classifier_forward.1} parent=1 // pred_region
      _
    $region17: #{dcc_classifier_forward.1} parent=1 // pred_fallthru
      _
    // Predicated region
    $region18: #{dcc_classifier_forward.1} parent=1 // pred_check
      _
    $region19: #{dcc_classifier_forward.1} parent=1 // pred_check_branch
      %56 = sbr.rel (0) target = $region21
    $region20: #{dcc_classifier_forward.1} parent=1 // pred_region
      %s58 = ssub.s32 32, 32
      %59 = vsyncadd [#allocation5], %s58
      %s61 = sshll.u32 [#allocation6], 4
      %s62 = int_to_ptr.vmem [resolvable:$true] %s61
      %64 = dma.hbm_to_vmem [thread:$0]  %s4, 32, %s62, [#allocation5]
    $region21: #{dcc_classifier_forward.1} parent=1 // pred_fallthru
      _
    // Predicated region
    $region22: #{dcc_classifier_forward.1} parent=1 // pred_check
      _
    $region23: #{dcc_classifier_forward.1} parent=1 // pred_check_branch
      %66 = sbr.rel (0) target = $region25
    $region24: #{dcc_classifier_forward.1} parent=1 // pred_region
      %s68 = ssub.s32 4096, 4096
      %69 = vsyncadd [#allocation8], %s68
      %s70 = sshll.u32 [#allocation7], 4
      %s71 = int_to_ptr.vmem [resolvable:$true] %s70
      %76 = dma.hbm_to_vmem [thread:$0]  %s5, 4096, %s71, [#allocation8], 128, 128, 8
    $region25: #{dcc_classifier_forward.1} parent=1 // pred_fallthru
      _
    // Predicated region
    $region26: #{dcc_classifier_forward.1} parent=1 // pred_check
      _
    $region27: #{dcc_classifier_forward.1} parent=1 // pred_check_branch
      %78 = sbr.rel (0) target = $region29
    $region28: #{dcc_classifier_forward.1} parent=1 // pred_region
      %s80 = ssub.s32 32, 32
      %81 = vsyncadd [#allocation8], %s80
      %s83 = sshll.u32 [#allocation9], 4
      %s84 = int_to_ptr.vmem [resolvable:$true] %s83
      %86 = dma.hbm_to_vmem [thread:$0]  %s6, 32, %s84, [#allocation8]
    $region29: #{dcc_classifier_forward.1} parent=1 // pred_fallthru
      _
    // Predicated region
    $region30: #{dcc_classifier_forward.1} parent=1 // pred_check
      _
    $region31: #{dcc_classifier_forward.1} parent=1 // pred_check_branch
      %88 = sbr.rel (0) target = $region33
    $region32: #{dcc_classifier_forward.1} parent=1 // pred_region
      %s90 = ssub.s32 4096, 4096
      %91 = vsyncadd [#allocation11], %s90
      %s92 = sshll.u32 [#allocation10], 4
      %s93 = int_to_ptr.vmem [resolvable:$true] %s92
      %98 = dma.hbm_to_vmem [thread:$0]  %s7, 4096, %s93, [#allocation11], 128, 128, 8
    $region33: #{dcc_classifier_forward.1} parent=1 // pred_fallthru
      _
    // Predicated region
    $region34: #{dcc_classifier_forward.1} parent=1 // pred_check
      _
    $region35: #{dcc_classifier_forward.1} parent=1 // pred_check_branch
      %100 = sbr.rel (0) target = $region37
    $region36: #{dcc_classifier_forward.1} parent=1 // pred_region
      %s102 = ssub.s32 32, 32
      %103 = vsyncadd [#allocation11], %s102
      %s105 = sshll.u32 [#allocation12], 4
      %s106 = int_to_ptr.vmem [resolvable:$true] %s105
      %108 = dma.hbm_to_vmem [thread:$0]  %s8, 32, %s106, [#allocation11]
    $region37: #{dcc_classifier_forward.1} parent=1 // pred_fallthru
      _
    // Predicated region
    $region38: #{dcc_classifier_forward.1} parent=1 // pred_check
      _
    $region39: #{dcc_classifier_forward.1} parent=1 // pred_check_branch
      %110 = sbr.rel (0) target = $region41
    $region40: #{dcc_classifier_forward.1} parent=1 // pred_region
      _
    $region41: #{dcc_classifier_forward.1} parent=1 // pred_fallthru
      _
    // Predicated region
    $region42: #{dcc_classifier_forward.1} parent=1 // pred_check
      _
    $region43: #{dcc_classifier_forward.1} parent=1 // pred_check_branch
      %112 = sbr.rel (0) target = $region45
    $region44: #{dcc_classifier_forward.1} parent=1 // pred_region
      _
    $region45: #{dcc_classifier_forward.1} parent=1 // pred_fallthru
      _
    // Predicated region
    $region46: #{dcc_classifier_forward.1} parent=1 // pred_check
      _
    $region47: #{dcc_classifier_forward.1} parent=1 // pred_check_branch
      %114 = sbr.rel (0) target = $region49
    $region48: #{dcc_classifier_forward.1} parent=1 // pred_region
      %s116 = ssub.s32 16, 16
      %117 = vsyncadd [#allocation14], %s116
      %s119 = sshll.u32 [#allocation13], 4
      %s120 = int_to_ptr.vmem [resolvable:$true] %s119
      %122 = dma.hbm_to_vmem [thread:$0]  %s11, 16, %s120, [#allocation14]
    $region49: #{dcc_classifier_forward.1} parent=1 // pred_fallthru
      _
    // Predicated region
    $region50: #{dcc_classifier_forward.1} parent=1 // pred_check
      _
    $region51: #{dcc_classifier_forward.1} parent=1 // pred_check_branch
      %124 = sbr.rel (0) target = $region53
    $region52: #{dcc_classifier_forward.1} parent=1 // pred_region
      %s126 = ssub.s32 16, 16
      %127 = vsyncadd [#allocation14], %s126
      %s129 = sshll.u32 [#allocation15], 4
      %s130 = int_to_ptr.vmem [resolvable:$true] %s129
      %132 = dma.hbm_to_vmem [thread:$0]  %s12, 16, %s130, [#allocation14]
    $region53: #{dcc_classifier_forward.1} parent=1 // pred_fallthru
      _
    // Predicated region
    $region54: #{dcc_classifier_forward.1} parent=1 // pred_check
      _
    $region55: #{dcc_classifier_forward.1} parent=1 // pred_check_branch
      %134 = sbr.rel (0) target = $region57
    $region56: #{dcc_classifier_forward.1} parent=1 // pred_region
      %s136 = ssub.s32 16, 16
      %137 = vsyncadd [#allocation17], %s136
      %s139 = sshll.u32 [#allocation16], 4
      %s140 = int_to_ptr.vmem [resolvable:$true] %s139
      %142 = dma.hbm_to_vmem [thread:$0]  %s13, 16, %s140, [#allocation17]
    $region57: #{dcc_classifier_forward.1} parent=1 // pred_fallthru
      _
    // Predicated region
    $region58: #{dcc_classifier_forward.1} parent=1 // pred_check
      _
    $region59: #{dcc_classifier_forward.1} parent=1 // pred_check_branch
      %144 = sbr.rel (0) target = $region61
    $region60: #{dcc_classifier_forward.1} parent=1 // pred_region
      %s146 = ssub.s32 16, 16
      %147 = vsyncadd [#allocation17], %s146
      %s149 = sshll.u32 [#allocation18], 4
      %s150 = int_to_ptr.vmem [resolvable:$true] %s149
      %152 = dma.hbm_to_vmem [thread:$0]  %s14, 16, %s150, [#allocation17]
    $region61: #{dcc_classifier_forward.1} parent=1 // pred_fallthru
      _
    // Predicated region
    $region62: #{dcc_classifier_forward.1} parent=1 // pred_check
      _
    $region63: #{dcc_classifier_forward.1} parent=1 // pred_check_branch
      %154 = sbr.rel (0) target = $region65
    $region64: #{dcc_classifier_forward.1} parent=1 // pred_region
      _
    $region65: #{dcc_classifier_forward.1} parent=1 // pred_fallthru
      _
    // Predicated region
    $region66: #{dcc_classifier_forward.1} parent=1 // pred_check
      _
    $region67: #{dcc_classifier_forward.1} parent=1 // pred_check_branch
      %156 = sbr.rel (0) target = $region69
    $region68: #{dcc_classifier_forward.1} parent=1 // pred_region
      %s158 = ssub.s32 16, 16
      %159 = vsyncadd [#allocation20], %s158
      %s161 = sshll.u32 [#allocation19], 4
      %s162 = int_to_ptr.vmem [resolvable:$true] %s161
      %164 = dma.hbm_to_vmem [thread:$0]  %s16, 16, %s162, [#allocation20]
    $region69: #{dcc_classifier_forward.1} parent=1 // pred_fallthru
      _
    // Predicated region
    $region70: #{dcc_classifier_forward.1} parent=1 // pred_check
      _
    $region71: #{dcc_classifier_forward.1} parent=1 // pred_check_branch
      %166 = sbr.rel (0) target = $region73
    $region72: #{dcc_classifier_forward.1} parent=1 // pred_region
      %167 = dma.done [#allocation3], 2048
    $region73: #{dcc_classifier_forward.1} parent=1 // pred_fallthru
      _
    // Predicated region
    $region74: #{dcc_classifier_forward.1} parent=1 // pred_check
      _
    $region75: #{dcc_classifier_forward.1} parent=1 // pred_check_branch
      %169 = sbr.rel (0) target = $region77
    $region76: #{dcc_classifier_forward.1} parent=1 // pred_region
      %170 = dma.done [#allocation5], 32
    $region77: #{dcc_classifier_forward.1} parent=1 // pred_fallthru
      _
    // Predicated region
    $region78: #{dcc_classifier_forward.1} parent=1 // pred_check
      _
    $region79: #{dcc_classifier_forward.1} parent=1 // pred_check_branch
      %172 = sbr.rel (0) target = $region81
    $region80: #{dcc_classifier_forward.1} parent=1 // pred_region
      %173 = dma.done [#allocation5], 32
    $region81: #{dcc_classifier_forward.1} parent=1 // pred_fallthru
      _
    // Predicated region
    $region82: #{dcc_classifier_forward.1} parent=1 // pred_check
      _
    $region83: #{dcc_classifier_forward.1} parent=1 // pred_check_branch
      %175 = sbr.rel (0) target = $region85
    $region84: #{dcc_classifier_forward.1} parent=1 // pred_region
      %176 = dma.done [#allocation8], 4096
    $region85: #{dcc_classifier_forward.1} parent=1 // pred_fallthru
      _
    // Predicated region
    $region86: #{dcc_classifier_forward.1} parent=1 // pred_check
      _
    $region87: #{dcc_classifier_forward.1} parent=1 // pred_check_branch
      %178 = sbr.rel (0) target = $region89
    $region88: #{dcc_classifier_forward.1} parent=1 // pred_region
      %179 = dma.done [#allocation8], 32
    $region89: #{dcc_classifier_forward.1} parent=1 // pred_fallthru
      _
    // Predicated region
    $region90: #{dcc_classifier_forward.1} parent=1 // pred_check
      _
    $region91: #{dcc_classifier_forward.1} parent=1 // pred_check_branch
      %181 = sbr.rel (0) target = $region93
    $region92: #{dcc_classifier_forward.1} parent=1 // pred_region
      %182 = dma.done [#allocation11], 4096
    $region93: #{dcc_classifier_forward.1} parent=1 // pred_fallthru
      _
    // Predicated region
    $region94: #{dcc_classifier_forward.1} parent=1 // pred_check
      _
    $region95: #{dcc_classifier_forward.1} parent=1 // pred_check_branch
      %184 = sbr.rel (0) target = $region97
    $region96: #{dcc_classifier_forward.1} parent=1 // pred_region
      %185 = dma.done [#allocation11], 32
    $region97: #{dcc_classifier_forward.1} parent=1 // pred_fallthru
      _
    // Predicated region
    $region98: #{dcc_classifier_forward.1} parent=1 // pred_check
      _
    $region99: #{dcc_classifier_forward.1} parent=1 // pred_check_branch
      %187 = sbr.rel (0) target = $region101
    $region100: #{dcc_classifier_forward.1} parent=1 // pred_region
      %188 = dma.done [#allocation14], 16
    $region101: #{dcc_classifier_forward.1} parent=1 // pred_fallthru
      _
    // Predicated region
    $region102: #{dcc_classifier_forward.1} parent=1 // pred_check
      _
    $region103: #{dcc_classifier_forward.1} parent=1 // pred_check_branch
      %190 = sbr.rel (0) target = $region105
    $region104: #{dcc_classifier_forward.1} parent=1 // pred_region
      %191 = dma.done [#allocation14], 16
    $region105: #{dcc_classifier_forward.1} parent=1 // pred_fallthru
      _
    // Predicated region
    $region106: #{dcc_classifier_forward.1} parent=1 // pred_check
      _
    $region107: #{dcc_classifier_forward.1} parent=1 // pred_check_branch
      %193 = sbr.rel (0) target = $region109
    $region108: #{dcc_classifier_forward.1} parent=1 // pred_region
      %194 = dma.done [#allocation17], 16
    $region109: #{dcc_classifier_forward.1} parent=1 // pred_fallthru
      _
    // Predicated region
    $region110: #{dcc_classifier_forward.1} parent=1 // pred_check
      _
    $region111: #{dcc_classifier_forward.1} parent=1 // pred_check_branch
      %196 = sbr.rel (0) target = $region113
    $region112: #{dcc_classifier_forward.1} parent=1 // pred_region
      %197 = dma.done [#allocation17], 16
    $region113: #{dcc_classifier_forward.1} parent=1 // pred_fallthru
      _
    // Predicated region
    $region114: #{dcc_classifier_forward.1} parent=1 // pred_check
      _
    $region115: #{dcc_classifier_forward.1} parent=1 // pred_check_branch
      %199 = sbr.rel (0) target = $region117
    $region116: #{dcc_classifier_forward.1} parent=1 // pred_region
      %200 = dma.done [#allocation20], 16
    $region117: #{dcc_classifier_forward.1} parent=1 // pred_fallthru
      _
    %v202 = vld [vmem:[%s0] sm:$0x3f]
    %v203 = vld [vmem:[#allocation2] sm:$0xff]
    %v204 = vld [vmem:[#allocation2 + $0x8] sm:$0xff]
    %v205 = vld [vmem:[#allocation2 + $0x10] sm:$0xff]
    %v206 = vld [vmem:[#allocation2 + $0x18] sm:$0xff]
    %v207 = vld [vmem:[#allocation2 + $0x20] sm:$0xff]
    %v208 = vld [vmem:[#allocation2 + $0x28] sm:$0xff]
    %v209 = vld [vmem:[#allocation2 + $0x30] sm:$0xff]
    %v210 = vld [vmem:[#allocation2 + $0x38] sm:$0xff]
    %v211 = vld [vmem:[#allocation2 + $0x40] sm:$0xff]
    %v212 = vld [vmem:[#allocation2 + $0x48] sm:$0xff]
    %v213 = vld [vmem:[#allocation2 + $0x50] sm:$0xff]
    %v214 = vld [vmem:[#allocation2 + $0x58] sm:$0xff]
    %v215 = vld [vmem:[#allocation2 + $0x60] sm:$0xff]
    %v216 = vld [vmem:[#allocation2 + $0x68] sm:$0xff]
    %v217 = vld [vmem:[#allocation2 + $0x70] sm:$0xff]
    %v218 = vld [vmem:[#allocation2 + $0x78] sm:$0xff]
    %v219 = vld [vmem:[#allocation4] sm:$0x3]
    %v220 = vpack.c.bf16 %v202, %v202
    %v222 = vlaneseq
    %v223 = vshrl.u32 %v222, 7
    %v224 = vsub.s32 0, %v223
    %v225 = vrot.slane %v219, %v224
    %v226 = vlaneseq
    %v227 = vshrl.u32 %v226, 7
    %v228 = vsub.s32 1, %v227
    %v229 = vrot.slane %v219, %v228
    %v248 = vunpack.c.l.b16 %v203
    %v249 = vunpack.c.h.b16 %v203
    %v250 = vunpack.c.l.b16 %v204
    %v251 = vunpack.c.h.b16 %v204
    %v252 = vunpack.c.l.b16 %v205
    %v253 = vunpack.c.h.b16 %v205
    %v254 = vunpack.c.l.b16 %v206
    %v255 = vunpack.c.h.b16 %v206
    %v256 = vunpack.c.l.b16 %v207
    %v257 = vunpack.c.h.b16 %v207
    %v258 = vunpack.c.l.b16 %v208
    %v259 = vunpack.c.h.b16 %v208
    %v260 = vunpack.c.l.b16 %v209
    %v261 = vunpack.c.h.b16 %v209
    %v262 = vunpack.c.l.b16 %v210
    %v263 = vunpack.c.h.b16 %v210
    %v264 = vunpack.c.l.b16 %v211
    %v265 = vunpack.c.h.b16 %v211
    %v266 = vunpack.c.l.b16 %v212
    %v267 = vunpack.c.h.b16 %v212
    %v268 = vunpack.c.l.b16 %v213
    %v269 = vunpack.c.h.b16 %v213
    %v270 = vunpack.c.l.b16 %v214
    %v271 = vunpack.c.h.b16 %v214
    %v272 = vunpack.c.l.b16 %v215
    %v273 = vunpack.c.h.b16 %v215
    %v274 = vunpack.c.l.b16 %v216
    %v275 = vunpack.c.h.b16 %v216
    %v276 = vunpack.c.l.b16 %v217
    %v277 = vunpack.c.h.b16 %v217
    %v278 = vunpack.c.l.b16 %v218
    %v279 = vunpack.c.h.b16 %v218
    %v280 = vpack.c.b16 %v250, %v248
    %v281 = vpack.c.b16 %v251, %v249
    %v282 = vpack.c.b16 %v254, %v252
    %v283 = vpack.c.b16 %v255, %v253
    %v284 = vpack.c.b16 %v258, %v256
    %v285 = vpack.c.b16 %v259, %v257
    %v286 = vpack.c.b16 %v262, %v260
    %v287 = vpack.c.b16 %v263, %v261
    %v288 = vpack.c.b16 %v266, %v264
    %v289 = vpack.c.b16 %v267, %v265
    %v290 = vpack.c.b16 %v270, %v268
    %v291 = vpack.c.b16 %v271, %v269
    %v292 = vpack.c.b16 %v274, %v272
    %v293 = vpack.c.b16 %v275, %v273
    %v294 = vpack.c.b16 %v278, %v276
    %v295 = vpack.c.b16 %v279, %v277
    %312 = vmatprep.subr.bf16.mxu0 %v281
    %313 = vmatpush1.bf16.msra.mxu0 %v280
    %314 = vmatprep.subr.bf16.mxu0 %v283
    %315 = vmatpush1.bf16.msra.mxu0 %v282
    %316 = vmatprep.subr.bf16.mxu0 %v285
    %317 = vmatpush1.bf16.msra.mxu0 %v284
    %318 = vmatprep.subr.bf16.mxu0 %v287
    %319 = vmatpush1.bf16.msra.mxu0 %v286
    %320 = vmatprep.subr.bf16.mxu0 %v289
    %321 = vmatpush1.bf16.msra.mxu0 %v288
    %322 = vmatprep.subr.bf16.mxu0 %v291
    %323 = vmatpush1.bf16.msra.mxu0 %v290
    %324 = vmatprep.subr.bf16.mxu0 %v293
    %325 = vmatpush1.bf16.msra.mxu0 %v292
    %326 = vmatprep.subr.bf16.mxu0 %v295
    %327 = vmatpush1.bf16.msra.mxu0 %v294
    %328 = vmatprep.subr.bf16.mxu0 0
    %329 = vmatpush1.bf16.msra.mxu0 0
    %330 = vmatprep.subr.bf16.mxu0 0
    %331 = vmatpush1.bf16.msra.mxu0 0
    %332 = vmatprep.subr.bf16.mxu0 0
    %333 = vmatpush1.bf16.msra.mxu0 0
    %334 = vmatprep.subr.bf16.mxu0 0
    %335 = vmatpush1.bf16.msra.mxu0 0
    %336 = vmatprep.subr.bf16.mxu0 0
    %337 = vmatpush1.bf16.msra.mxu0 0
    %338 = vmatprep.subr.bf16.mxu0 0
    %339 = vmatpush1.bf16.msra.mxu0 0
    %340 = vmatprep.subr.bf16.mxu0 0
    %341 = vmatpush1.bf16.msra.mxu0 0
    %342 = vmatprep.subr.bf16.mxu0 0
    %343 = vmatpush1.bf16.msra.mxu0 0
    %344 = vmatprep.mubr.bf16.mxu0 0
    %345 = vmatmul.mubr.bf16.gmra.mrb[0].mxu0 %v220
    %v346 = vpop.f32.mrb[0].mxu0
    %v347 = vadd.f32 %v225, %v346
    %v348 = vpop.f32.mrb[0].mxu0
    %v349 = vadd.f32 %v229, %v348
    %v350 = vpop.f32.mrb[0].mxu0
    %v351 = vpop.f32.mrb[0].mxu0
    %352 = vdwg.mxu0
    %v353 = vmax.f32 %v347, 0.0
    %v354 = vmax.f32 %v349, 0.0
    %v355 = vld [vmem:[%s3] sm:$0xff]
    %v356 = vld [vmem:[%s3 + $0x8] sm:$0xff]
    %v357 = vld [vmem:[%s3 + $0x10] sm:$0xff]
    %v358 = vld [vmem:[%s3 + $0x18] sm:$0xff]
    %v359 = vld [vmem:[%s3 + $0x20] sm:$0xff]
    %v360 = vld [vmem:[%s3 + $0x28] sm:$0xff]
    %v361 = vld [vmem:[%s3 + $0x30] sm:$0xff]
    %v362 = vld [vmem:[%s3 + $0x38] sm:$0xff]
    %v363 = vld [vmem:[%s3 + $0x40] sm:$0xff]
    %v364 = vld [vmem:[%s3 + $0x48] sm:$0xff]
    %v365 = vld [vmem:[%s3 + $0x50] sm:$0xff]
    %v366 = vld [vmem:[%s3 + $0x58] sm:$0xff]
    %v367 = vld [vmem:[%s3 + $0x60] sm:$0xff]
    %v368 = vld [vmem:[%s3 + $0x68] sm:$0xff]
    %v369 = vld [vmem:[%s3 + $0x70] sm:$0xff]
    %v370 = vld [vmem:[%s3 + $0x78] sm:$0xff]
    %v371 = vld [vmem:[%s3 + $0x80] sm:$0xff]
    %v372 = vld [vmem:[%s3 + $0x88] sm:$0xff]
    %v373 = vld [vmem:[%s3 + $0x90] sm:$0xff]
    %v374 = vld [vmem:[%s3 + $0x98] sm:$0xff]
    %v375 = vld [vmem:[%s3 + $0xa0] sm:$0xff]
    %v376 = vld [vmem:[%s3 + $0xa8] sm:$0xff]
    %v377 = vld [vmem:[%s3 + $0xb0] sm:$0xff]
    %v378 = vld [vmem:[%s3 + $0xb8] sm:$0xff]
    %v379 = vld [vmem:[%s3 + $0xc0] sm:$0xff]
    %v380 = vld [vmem:[%s3 + $0xc8] sm:$0xff]
    %v381 = vld [vmem:[%s3 + $0xd0] sm:$0xff]
    %v382 = vld [vmem:[%s3 + $0xd8] sm:$0xff]
    %v383 = vld [vmem:[%s3 + $0xe0] sm:$0xff]
    %v384 = vld [vmem:[%s3 + $0xe8] sm:$0xff]
    %v385 = vld [vmem:[%s3 + $0xf0] sm:$0xff]
    %v386 = vld [vmem:[%s3 + $0xf8] sm:$0xff]
    %v387 = vld [vmem:[#allocation6] sm:$0x3]
    %v388 = vpack.c.bf16 %v353, %v353
    %v389 = vpack.c.bf16 %v354, %v354
    %v391 = vlaneseq
    %v392 = vshrl.u32 %v391, 7
    %v393 = vsub.s32 0, %v392
    %v394 = vrot.slane %v387, %v393
    %v395 = vlaneseq
    %v396 = vshrl.u32 %v395, 7
    %v397 = vsub.s32 1, %v396
    %v398 = vrot.slane %v387, %v397
    %v433 = vunpack.c.l.b16 %v355
    %v434 = vunpack.c.h.b16 %v355
    %v435 = vunpack.c.l.b16 %v356
    %v436 = vunpack.c.h.b16 %v356
    %v437 = vunpack.c.l.b16 %v357
    %v438 = vunpack.c.h.b16 %v357
    %v439 = vunpack.c.l.b16 %v358
    %v440 = vunpack.c.h.b16 %v358
    %v441 = vunpack.c.l.b16 %v359
    %v442 = vunpack.c.h.b16 %v359
    %v443 = vunpack.c.l.b16 %v360
    %v444 = vunpack.c.h.b16 %v360
    %v445 = vunpack.c.l.b16 %v361
    %v446 = vunpack.c.h.b16 %v361
    %v447 = vunpack.c.l.b16 %v362
    %v448 = vunpack.c.h.b16 %v362
    %v449 = vunpack.c.l.b16 %v363
    %v450 = vunpack.c.h.b16 %v363
    %v451 = vunpack.c.l.b16 %v364
    %v452 = vunpack.c.h.b16 %v364
    %v453 = vunpack.c.l.b16 %v365
    %v454 = vunpack.c.h.b16 %v365
    %v455 = vunpack.c.l.b16 %v366
    %v456 = vunpack.c.h.b16 %v366
    %v457 = vunpack.c.l.b16 %v367
    %v458 = vunpack.c.h.b16 %v367
    %v459 = vunpack.c.l.b16 %v368
    %v460 = vunpack.c.h.b16 %v368
    %v461 = vunpack.c.l.b16 %v369
    %v462 = vunpack.c.h.b16 %v369
    %v463 = vunpack.c.l.b16 %v370
    %v464 = vunpack.c.h.b16 %v370
    %v465 = vunpack.c.l.b16 %v371
    %v466 = vunpack.c.h.b16 %v371
    %v467 = vunpack.c.l.b16 %v372
    %v468 = vunpack.c.h.b16 %v372
    %v469 = vunpack.c.l.b16 %v373
    %v470 = vunpack.c.h.b16 %v373
    %v471 = vunpack.c.l.b16 %v374
    %v472 = vunpack.c.h.b16 %v374
    %v473 = vunpack.c.l.b16 %v375
    %v474 = vunpack.c.h.b16 %v375
    %v475 = vunpack.c.l.b16 %v376
    %v476 = vunpack.c.h.b16 %v376
    %v477 = vunpack.c.l.b16 %v377
    %v478 = vunpack.c.h.b16 %v377
    %v479 = vunpack.c.l.b16 %v378
    %v480 = vunpack.c.h.b16 %v378
    %v481 = vunpack.c.l.b16 %v379
    %v482 = vunpack.c.h.b16 %v379
    %v483 = vunpack.c.l.b16 %v380
    %v484 = vunpack.c.h.b16 %v380
    %v485 = vunpack.c.l.b16 %v381
    %v486 = vunpack.c.h.b16 %v381
    %v487 = vunpack.c.l.b16 %v382
    %v488 = vunpack.c.h.b16 %v382
    %v489 = vunpack.c.l.b16 %v383
    %v490 = vunpack.c.h.b16 %v383
    %v491 = vunpack.c.l.b16 %v384
    %v492 = vunpack.c.h.b16 %v384
    %v493 = vunpack.c.l.b16 %v385
    %v494 = vunpack.c.h.b16 %v385
    %v495 = vunpack.c.l.b16 %v386
    %v496 = vunpack.c.h.b16 %v386
    %v497 = vpack.c.b16 %v435, %v433
    %v498 = vpack.c.b16 %v436, %v434
    %v499 = vpack.c.b16 %v439, %v437
    %v500 = vpack.c.b16 %v440, %v438
    %v501 = vpack.c.b16 %v443, %v441
    %v502 = vpack.c.b16 %v444, %v442
    %v503 = vpack.c.b16 %v447, %v445
    %v504 = vpack.c.b16 %v448, %v446
    %v505 = vpack.c.b16 %v451, %v449
    %v506 = vpack.c.b16 %v452, %v450
    %v507 = vpack.c.b16 %v455, %v453
    %v508 = vpack.c.b16 %v456, %v454
    %v509 = vpack.c.b16 %v459, %v457
    %v510 = vpack.c.b16 %v460, %v458
    %v511 = vpack.c.b16 %v463, %v461
    %v512 = vpack.c.b16 %v464, %v462
    %v513 = vpack.c.b16 %v467, %v465
    %v514 = vpack.c.b16 %v468, %v466
    %v515 = vpack.c.b16 %v471, %v469
    %v516 = vpack.c.b16 %v472, %v470
    %v517 = vpack.c.b16 %v475, %v473
    %v518 = vpack.c.b16 %v476, %v474
    %v519 = vpack.c.b16 %v479, %v477
    %v520 = vpack.c.b16 %v480, %v478
    %v521 = vpack.c.b16 %v483, %v481
    %v522 = vpack.c.b16 %v484, %v482
    %v523 = vpack.c.b16 %v487, %v485
    %v524 = vpack.c.b16 %v488, %v486
    %v525 = vpack.c.b16 %v491, %v489
    %v526 = vpack.c.b16 %v492, %v490
    %v527 = vpack.c.b16 %v495, %v493
    %v528 = vpack.c.b16 %v496, %v494
    %561 = vmatprep.subr.bf16.mxu0 %v498
    %562 = vmatpush1.bf16.msra.mxu0 %v497
    %563 = vmatprep.subr.bf16.mxu0 %v500
    %564 = vmatpush1.bf16.msra.mxu0 %v499
    %565 = vmatprep.subr.bf16.mxu0 %v502
    %566 = vmatpush1.bf16.msra.mxu0 %v501
    %567 = vmatprep.subr.bf16.mxu0 %v504
    %568 = vmatpush1.bf16.msra.mxu0 %v503
    %569 = vmatprep.subr.bf16.mxu0 %v506
    %570 = vmatpush1.bf16.msra.mxu0 %v505
    %571 = vmatprep.subr.bf16.mxu0 %v508
    %572 = vmatpush1.bf16.msra.mxu0 %v507
    %573 = vmatprep.subr.bf16.mxu0 %v510
    %574 = vmatpush1.bf16.msra.mxu0 %v509
    %575 = vmatprep.subr.bf16.mxu0 %v512
    %576 = vmatpush1.bf16.msra.mxu0 %v511
    %577 = vmatprep.subr.bf16.mxu0 %v514
    %578 = vmatpush1.bf16.msra.mxu0 %v513
    %579 = vmatprep.subr.bf16.mxu0 %v516
    %580 = vmatpush1.bf16.msra.mxu0 %v515
    %581 = vmatprep.subr.bf16.mxu0 %v518
    %582 = vmatpush1.bf16.msra.mxu0 %v517
    %583 = vmatprep.subr.bf16.mxu0 %v520
    %584 = vmatpush1.bf16.msra.mxu0 %v519
    %585 = vmatprep.subr.bf16.mxu0 %v522
    %586 = vmatpush1.bf16.msra.mxu0 %v521
    %587 = vmatprep.subr.bf16.mxu0 %v524
    %588 = vmatpush1.bf16.msra.mxu0 %v523
    %589 = vmatprep.subr.bf16.mxu0 %v526
    %590 = vmatpush1.bf16.msra.mxu0 %v525
    %591 = vmatprep.subr.bf16.mxu0 %v528
    %592 = vmatpush1.bf16.msra.mxu0 %v527
    %593 = vmatprep.mubr.bf16.mxu0 %v389
    %594 = vmatmul.mubr.bf16.gmra.mrb[0].mxu0 %v388
    %v595 = vpop.f32.mrb[0].mxu0
    %v596 = vadd.f32 %v394, %v595
    %v597 = vpop.f32.mrb[0].mxu0
    %v598 = vadd.f32 %v398, %v597
    %v599 = vpop.f32.mrb[0].mxu0
    %v600 = vpop.f32.mrb[0].mxu0
    %601 = vdwg.mxu0
    %v602 = vmax.f32 %v596, 0.0
    %v603 = vmax.f32 %v598, 0.0
    %v604 = vld [vmem:[#allocation7] sm:$0xff]
    %v605 = vld [vmem:[#allocation7 + $0x8] sm:$0xff]
    %v606 = vld [vmem:[#allocation7 + $0x10] sm:$0xff]
    %v607 = vld [vmem:[#allocation7 + $0x18] sm:$0xff]
    %v608 = vld [vmem:[#allocation7 + $0x20] sm:$0xff]
    %v609 = vld [vmem:[#allocation7 + $0x28] sm:$0xff]
    %v610 = vld [vmem:[#allocation7 + $0x30] sm:$0xff]
    %v611 = vld [vmem:[#allocation7 + $0x38] sm:$0xff]
    %v612 = vld [vmem:[#allocation7 + $0x40] sm:$0xff]
    %v613 = vld [vmem:[#allocation7 + $0x48] sm:$0xff]
    %v614 = vld [vmem:[#allocation7 + $0x50] sm:$0xff]
    %v615 = vld [vmem:[#allocation7 + $0x58] sm:$0xff]
    %v616 = vld [vmem:[#allocation7 + $0x60] sm:$0xff]
    %v617 = vld [vmem:[#allocation7 + $0x68] sm:$0xff]
    %v618 = vld [vmem:[#allocation7 + $0x70] sm:$0xff]
    %v619 = vld [vmem:[#allocation7 + $0x78] sm:$0xff]
    %v620 = vld [vmem:[#allocation7 + $0x80] sm:$0xff]
    %v621 = vld [vmem:[#allocation7 + $0x88] sm:$0xff]
    %v622 = vld [vmem:[#allocation7 + $0x90] sm:$0xff]
    %v623 = vld [vmem:[#allocation7 + $0x98] sm:$0xff]
    %v624 = vld [vmem:[#allocation7 + $0xa0] sm:$0xff]
    %v625 = vld [vmem:[#allocation7 + $0xa8] sm:$0xff]
    %v626 = vld [vmem:[#allocation7 + $0xb0] sm:$0xff]
    %v627 = vld [vmem:[#allocation7 + $0xb8] sm:$0xff]
    %v628 = vld [vmem:[#allocation7 + $0xc0] sm:$0xff]
    %v629 = vld [vmem:[#allocation7 + $0xc8] sm:$0xff]
    %v630 = vld [vmem:[#allocation7 + $0xd0] sm:$0xff]
    %v631 = vld [vmem:[#allocation7 + $0xd8] sm:$0xff]
    %v632 = vld [vmem:[#allocation7 + $0xe0] sm:$0xff]
    %v633 = vld [vmem:[#allocation7 + $0xe8] sm:$0xff]
    %v634 = vld [vmem:[#allocation7 + $0xf0] sm:$0xff]
    %v635 = vld [vmem:[#allocation7 + $0xf8] sm:$0xff]
    %v636 = vld [vmem:[#allocation9] sm:$0x3]
    %v637 = vpack.c.bf16 %v602, %v602
    %v638 = vpack.c.bf16 %v603, %v603
    %v640 = vlaneseq
    %v641 = vshrl.u32 %v640, 7
    %v642 = vsub.s32 0, %v641
    %v643 = vrot.slane %v636, %v642
    %v644 = vlaneseq
    %v645 = vshrl.u32 %v644, 7
    %v646 = vsub.s32 1, %v645
    %v647 = vrot.slane %v636, %v646
    %v682 = vunpack.c.l.b16 %v604
    %v683 = vunpack.c.h.b16 %v604
    %v684 = vunpack.c.l.b16 %v605
    %v685 = vunpack.c.h.b16 %v605
    %v686 = vunpack.c.l.b16 %v606
    %v687 = vunpack.c.h.b16 %v606
    %v688 = vunpack.c.l.b16 %v607
    %v689 = vunpack.c.h.b16 %v607
    %v690 = vunpack.c.l.b16 %v608
    %v691 = vunpack.c.h.b16 %v608
    %v692 = vunpack.c.l.b16 %v609
    %v693 = vunpack.c.h.b16 %v609
    %v694 = vunpack.c.l.b16 %v610
    %v695 = vunpack.c.h.b16 %v610
    %v696 = vunpack.c.l.b16 %v611
    %v697 = vunpack.c.h.b16 %v611
    %v698 = vunpack.c.l.b16 %v612
    %v699 = vunpack.c.h.b16 %v612
    %v700 = vunpack.c.l.b16 %v613
    %v701 = vunpack.c.h.b16 %v613
    %v702 = vunpack.c.l.b16 %v614
    %v703 = vunpack.c.h.b16 %v614
    %v704 = vunpack.c.l.b16 %v615
    %v705 = vunpack.c.h.b16 %v615
    %v706 = vunpack.c.l.b16 %v616
    %v707 = vunpack.c.h.b16 %v616
    %v708 = vunpack.c.l.b16 %v617
    %v709 = vunpack.c.h.b16 %v617
    %v710 = vunpack.c.l.b16 %v618
    %v711 = vunpack.c.h.b16 %v618
    %v712 = vunpack.c.l.b16 %v619
    %v713 = vunpack.c.h.b16 %v619
    %v714 = vunpack.c.l.b16 %v620
    %v715 = vunpack.c.h.b16 %v620
    %v716 = vunpack.c.l.b16 %v621
    %v717 = vunpack.c.h.b16 %v621
    %v718 = vunpack.c.l.b16 %v622
    %v719 = vunpack.c.h.b16 %v622
    %v720 = vunpack.c.l.b16 %v623
    %v721 = vunpack.c.h.b16 %v623
    %v722 = vunpack.c.l.b16 %v624
    %v723 = vunpack.c.h.b16 %v624
    %v724 = vunpack.c.l.b16 %v625
    %v725 = vunpack.c.h.b16 %v625
    %v726 = vunpack.c.l.b16 %v626
    %v727 = vunpack.c.h.b16 %v626
    %v728 = vunpack.c.l.b16 %v627
    %v729 = vunpack.c.h.b16 %v627
    %v730 = vunpack.c.l.b16 %v628
    %v731 = vunpack.c.h.b16 %v628
    %v732 = vunpack.c.l.b16 %v629
    %v733 = vunpack.c.h.b16 %v629
    %v734 = vunpack.c.l.b16 %v630
    %v735 = vunpack.c.h.b16 %v630
    %v736 = vunpack.c.l.b16 %v631
    %v737 = vunpack.c.h.b16 %v631
    %v738 = vunpack.c.l.b16 %v632
    %v739 = vunpack.c.h.b16 %v632
    %v740 = vunpack.c.l.b16 %v633
    %v741 = vunpack.c.h.b16 %v633
    %v742 = vunpack.c.l.b16 %v634
    %v743 = vunpack.c.h.b16 %v634
    %v744 = vunpack.c.l.b16 %v635
    %v745 = vunpack.c.h.b16 %v635
    %v746 = vpack.c.b16 %v684, %v682
    %v747 = vpack.c.b16 %v685, %v683
    %v748 = vpack.c.b16 %v688, %v686
    %v749 = vpack.c.b16 %v689, %v687
    %v750 = vpack.c.b16 %v692, %v690
    %v751 = vpack.c.b16 %v693, %v691
    %v752 = vpack.c.b16 %v696, %v694
    %v753 = vpack.c.b16 %v697, %v695
    %v754 = vpack.c.b16 %v700, %v698
    %v755 = vpack.c.b16 %v701, %v699
    %v756 = vpack.c.b16 %v704, %v702
    %v757 = vpack.c.b16 %v705, %v703
    %v758 = vpack.c.b16 %v708, %v706
    %v759 = vpack.c.b16 %v709, %v707
    %v760 = vpack.c.b16 %v712, %v710
    %v761 = vpack.c.b16 %v713, %v711
    %v762 = vpack.c.b16 %v716, %v714
    %v763 = vpack.c.b16 %v717, %v715
    %v764 = vpack.c.b16 %v720, %v718
    %v765 = vpack.c.b16 %v721, %v719
    %v766 = vpack.c.b16 %v724, %v722
    %v767 = vpack.c.b16 %v725, %v723
    %v768 = vpack.c.b16 %v728, %v726
    %v769 = vpack.c.b16 %v729, %v727
    %v770 = vpack.c.b16 %v732, %v730
    %v771 = vpack.c.b16 %v733, %v731
    %v772 = vpack.c.b16 %v736, %v734
    %v773 = vpack.c.b16 %v737, %v735
    %v774 = vpack.c.b16 %v740, %v738
    %v775 = vpack.c.b16 %v741, %v739
    %v776 = vpack.c.b16 %v744, %v742
    %v777 = vpack.c.b16 %v745, %v743
    %810 = vmatprep.subr.bf16.mxu0 %v747
    %811 = vmatpush1.bf16.msra.mxu0 %v746
    %812 = vmatprep.subr.bf16.mxu0 %v749
    %813 = vmatpush1.bf16.msra.mxu0 %v748
    %814 = vmatprep.subr.bf16.mxu0 %v751
    %815 = vmatpush1.bf16.msra.mxu0 %v750
    %816 = vmatprep.subr.bf16.mxu0 %v753
    %817 = vmatpush1.bf16.msra.mxu0 %v752
    %818 = vmatprep.subr.bf16.mxu0 %v755
    %819 = vmatpush1.bf16.msra.mxu0 %v754
    %820 = vmatprep.subr.bf16.mxu0 %v757
    %821 = vmatpush1.bf16.msra.mxu0 %v756
    %822 = vmatprep.subr.bf16.mxu0 %v759
    %823 = vmatpush1.bf16.msra.mxu0 %v758
    %824 = vmatprep.subr.bf16.mxu0 %v761
    %825 = vmatpush1.bf16.msra.mxu0 %v760
    %826 = vmatprep.subr.bf16.mxu0 %v763
    %827 = vmatpush1.bf16.msra.mxu0 %v762
    %828 = vmatprep.subr.bf16.mxu0 %v765
    %829 = vmatpush1.bf16.msra.mxu0 %v764
    %830 = vmatprep.subr.bf16.mxu0 %v767
    %831 = vmatpush1.bf16.msra.mxu0 %v766
    %832 = vmatprep.subr.bf16.mxu0 %v769
    %833 = vmatpush1.bf16.msra.mxu0 %v768
    %834 = vmatprep.subr.bf16.mxu0 %v771
    %835 = vmatpush1.bf16.msra.mxu0 %v770
    %836 = vmatprep.subr.bf16.mxu0 %v773
    %837 = vmatpush1.bf16.msra.mxu0 %v772
    %838 = vmatprep.subr.bf16.mxu0 %v775
    %839 = vmatpush1.bf16.msra.mxu0 %v774
    %840 = vmatprep.subr.bf16.mxu0 %v777
    %841 = vmatpush1.bf16.msra.mxu0 %v776
    %842 = vmatprep.mubr.bf16.mxu0 %v638
    %843 = vmatmul.mubr.bf16.gmra.mrb[0].mxu0 %v637
    %v844 = vpop.f32.mrb[0].mxu0
    %v845 = vadd.f32 %v643, %v844
    %v846 = vpop.f32.mrb[0].mxu0
    %v847 = vadd.f32 %v647, %v846
    %v848 = vpop.f32.mrb[0].mxu0
    %v849 = vpop.f32.mrb[0].mxu0
    %850 = vdwg.mxu0
    %v851 = vmax.f32 %v845, 0.0
    %v852 = vmax.f32 %v847, 0.0
    %v853 = vld [vmem:[#allocation10] sm:$0xff]
    %v854 = vld [vmem:[#allocation10 + $0x8] sm:$0xff]
    %v855 = vld [vmem:[#allocation10 + $0x10] sm:$0xff]
    %v856 = vld [vmem:[#allocation10 + $0x18] sm:$0xff]
    %v857 = vld [vmem:[#allocation10 + $0x20] sm:$0xff]
    %v858 = vld [vmem:[#allocation10 + $0x28] sm:$0xff]
    %v859 = vld [vmem:[#allocation10 + $0x30] sm:$0xff]
    %v860 = vld [vmem:[#allocation10 + $0x38] sm:$0xff]
    %v861 = vld [vmem:[#allocation10 + $0x40] sm:$0xff]
    %v862 = vld [vmem:[#allocation10 + $0x48] sm:$0xff]
    %v863 = vld [vmem:[#allocation10 + $0x50] sm:$0xff]
    %v864 = vld [vmem:[#allocation10 + $0x58] sm:$0xff]
    %v865 = vld [vmem:[#allocation10 + $0x60] sm:$0xff]
    %v866 = vld [vmem:[#allocation10 + $0x68] sm:$0xff]
    %v867 = vld [vmem:[#allocation10 + $0x70] sm:$0xff]
    %v868 = vld [vmem:[#allocation10 + $0x78] sm:$0xff]
    %v869 = vld [vmem:[#allocation10 + $0x80] sm:$0xff]
    %v870 = vld [vmem:[#allocation10 + $0x88] sm:$0xff]
    %v871 = vld [vmem:[#allocation10 + $0x90] sm:$0xff]
    %v872 = vld [vmem:[#allocation10 + $0x98] sm:$0xff]
    %v873 = vld [vmem:[#allocation10 + $0xa0] sm:$0xff]
    %v874 = vld [vmem:[#allocation10 + $0xa8] sm:$0xff]
    %v875 = vld [vmem:[#allocation10 + $0xb0] sm:$0xff]
    %v876 = vld [vmem:[#allocation10 + $0xb8] sm:$0xff]
    %v877 = vld [vmem:[#allocation10 + $0xc0] sm:$0xff]
    %v878 = vld [vmem:[#allocation10 + $0xc8] sm:$0xff]
    %v879 = vld [vmem:[#allocation10 + $0xd0] sm:$0xff]
    %v880 = vld [vmem:[#allocation10 + $0xd8] sm:$0xff]
    %v881 = vld [vmem:[#allocation10 + $0xe0] sm:$0xff]
    %v882 = vld [vmem:[#allocation10 + $0xe8] sm:$0xff]
    %v883 = vld [vmem:[#allocation10 + $0xf0] sm:$0xff]
    %v884 = vld [vmem:[#allocation10 + $0xf8] sm:$0xff]
    %v885 = vld [vmem:[#allocation12] sm:$0x3]
    %v886 = vpack.c.bf16 %v851, %v851
    %v887 = vpack.c.bf16 %v852, %v852
    %v889 = vlaneseq
    %v890 = vshrl.u32 %v889, 7
    %v891 = vsub.s32 0, %v890
    %v892 = vrot.slane %v885, %v891
    %v893 = vlaneseq
    %v894 = vshrl.u32 %v893, 7
    %v895 = vsub.s32 1, %v894
    %v896 = vrot.slane %v885, %v895
    %v931 = vunpack.c.l.b16 %v853
    %v932 = vunpack.c.h.b16 %v853
    %v933 = vunpack.c.l.b16 %v854
    %v934 = vunpack.c.h.b16 %v854
    %v935 = vunpack.c.l.b16 %v855
    %v936 = vunpack.c.h.b16 %v855
    %v937 = vunpack.c.l.b16 %v856
    %v938 = vunpack.c.h.b16 %v856
    %v939 = vunpack.c.l.b16 %v857
    %v940 = vunpack.c.h.b16 %v857
    %v941 = vunpack.c.l.b16 %v858
    %v942 = vunpack.c.h.b16 %v858
    %v943 = vunpack.c.l.b16 %v859
    %v944 = vunpack.c.h.b16 %v859
    %v945 = vunpack.c.l.b16 %v860
    %v946 = vunpack.c.h.b16 %v860
    %v947 = vunpack.c.l.b16 %v861
    %v948 = vunpack.c.h.b16 %v861
    %v949 = vunpack.c.l.b16 %v862
    %v950 = vunpack.c.h.b16 %v862
    %v951 = vunpack.c.l.b16 %v863
    %v952 = vunpack.c.h.b16 %v863
    %v953 = vunpack.c.l.b16 %v864
    %v954 = vunpack.c.h.b16 %v864
    %v955 = vunpack.c.l.b16 %v865
    %v956 = vunpack.c.h.b16 %v865
    %v957 = vunpack.c.l.b16 %v866
    %v958 = vunpack.c.h.b16 %v866
    %v959 = vunpack.c.l.b16 %v867
    %v960 = vunpack.c.h.b16 %v867
    %v961 = vunpack.c.l.b16 %v868
    %v962 = vunpack.c.h.b16 %v868
    %v963 = vunpack.c.l.b16 %v869
    %v964 = vunpack.c.h.b16 %v869
    %v965 = vunpack.c.l.b16 %v870
    %v966 = vunpack.c.h.b16 %v870
    %v967 = vunpack.c.l.b16 %v871
    %v968 = vunpack.c.h.b16 %v871
    %v969 = vunpack.c.l.b16 %v872
    %v970 = vunpack.c.h.b16 %v872
    %v971 = vunpack.c.l.b16 %v873
    %v972 = vunpack.c.h.b16 %v873
    %v973 = vunpack.c.l.b16 %v874
    %v974 = vunpack.c.h.b16 %v874
    %v975 = vunpack.c.l.b16 %v875
    %v976 = vunpack.c.h.b16 %v875
    %v977 = vunpack.c.l.b16 %v876
    %v978 = vunpack.c.h.b16 %v876
    %v979 = vunpack.c.l.b16 %v877
    %v980 = vunpack.c.h.b16 %v877
    %v981 = vunpack.c.l.b16 %v878
    %v982 = vunpack.c.h.b16 %v878
    %v983 = vunpack.c.l.b16 %v879
    %v984 = vunpack.c.h.b16 %v879
    %v985 = vunpack.c.l.b16 %v880
    %v986 = vunpack.c.h.b16 %v880
    %v987 = vunpack.c.l.b16 %v881
    %v988 = vunpack.c.h.b16 %v881
    %v989 = vunpack.c.l.b16 %v882
    %v990 = vunpack.c.h.b16 %v882
    %v991 = vunpack.c.l.b16 %v883
    %v992 = vunpack.c.h.b16 %v883
    %v993 = vunpack.c.l.b16 %v884
    %v994 = vunpack.c.h.b16 %v884
    %v995 = vpack.c.b16 %v933, %v931
    %v996 = vpack.c.b16 %v934, %v932
    %v997 = vpack.c.b16 %v937, %v935
    %v998 = vpack.c.b16 %v938, %v936
    %v999 = vpack.c.b16 %v941, %v939
    %v1000 = vpack.c.b16 %v942, %v940
    %v1001 = vpack.c.b16 %v945, %v943
    %v1002 = vpack.c.b16 %v946, %v944
    %v1003 = vpack.c.b16 %v949, %v947
    %v1004 = vpack.c.b16 %v950, %v948
    %v1005 = vpack.c.b16 %v953, %v951
    %v1006 = vpack.c.b16 %v954, %v952
    %v1007 = vpack.c.b16 %v957, %v955
    %v1008 = vpack.c.b16 %v958, %v956
    %v1009 = vpack.c.b16 %v961, %v959
    %v1010 = vpack.c.b16 %v962, %v960
    %v1011 = vpack.c.b16 %v965, %v963
    %v1012 = vpack.c.b16 %v966, %v964
    %v1013 = vpack.c.b16 %v969, %v967
    %v1014 = vpack.c.b16 %v970, %v968
    %v1015 = vpack.c.b16 %v973, %v971
    %v1016 = vpack.c.b16 %v974, %v972
    %v1017 = vpack.c.b16 %v977, %v975
    %v1018 = vpack.c.b16 %v978, %v976
    %v1019 = vpack.c.b16 %v981, %v979
    %v1020 = vpack.c.b16 %v982, %v980
    %v1021 = vpack.c.b16 %v985, %v983
    %v1022 = vpack.c.b16 %v986, %v984
    %v1023 = vpack.c.b16 %v989, %v987
    %v1024 = vpack.c.b16 %v990, %v988
    %v1025 = vpack.c.b16 %v993, %v991
    %v1026 = vpack.c.b16 %v994, %v992
    %1059 = vmatprep.subr.bf16.mxu0 %v996
    %1060 = vmatpush1.bf16.msra.mxu0 %v995
    %1061 = vmatprep.subr.bf16.mxu0 %v998
    %1062 = vmatpush1.bf16.msra.mxu0 %v997
    %1063 = vmatprep.subr.bf16.mxu0 %v1000
    %1064 = vmatpush1.bf16.msra.mxu0 %v999
    %1065 = vmatprep.subr.bf16.mxu0 %v1002
    %1066 = vmatpush1.bf16.msra.mxu0 %v1001
    %1067 = vmatprep.subr.bf16.mxu0 %v1004
    %1068 = vmatpush1.bf16.msra.mxu0 %v1003
    %1069 = vmatprep.subr.bf16.mxu0 %v1006
    %1070 = vmatpush1.bf16.msra.mxu0 %v1005
    %1071 = vmatprep.subr.bf16.mxu0 %v1008
    %1072 = vmatpush1.bf16.msra.mxu0 %v1007
    %1073 = vmatprep.subr.bf16.mxu0 %v1010
    %1074 = vmatpush1.bf16.msra.mxu0 %v1009
    %1075 = vmatprep.subr.bf16.mxu0 %v1012
    %1076 = vmatpush1.bf16.msra.mxu0 %v1011
    %1077 = vmatprep.subr.bf16.mxu0 %v1014
    %1078 = vmatpush1.bf16.msra.mxu0 %v1013
    %1079 = vmatprep.subr.bf16.mxu0 %v1016
    %1080 = vmatpush1.bf16.msra.mxu0 %v1015
    %1081 = vmatprep.subr.bf16.mxu0 %v1018
    %1082 = vmatpush1.bf16.msra.mxu0 %v1017
    %1083 = vmatprep.subr.bf16.mxu0 %v1020
    %1084 = vmatpush1.bf16.msra.mxu0 %v1019
    %1085 = vmatprep.subr.bf16.mxu0 %v1022
    %1086 = vmatpush1.bf16.msra.mxu0 %v1021
    %1087 = vmatprep.subr.bf16.mxu0 %v1024
    %1088 = vmatpush1.bf16.msra.mxu0 %v1023
    %1089 = vmatprep.subr.bf16.mxu0 %v1026
    %1090 = vmatpush1.bf16.msra.mxu0 %v1025
    %1091 = vmatprep.mubr.bf16.mxu0 %v887
    %1092 = vmatmul.mubr.bf16.gmra.mrb[0].mxu0 %v886
    %v1093 = vpop.f32.mrb[0].mxu0
    %v1094 = vadd.f32 %v892, %v1093
    %v1095 = vpop.f32.mrb[0].mxu0
    %v1096 = vadd.f32 %v896, %v1095
    %v1097 = vpop.f32.mrb[0].mxu0
    %v1098 = vpop.f32.mrb[0].mxu0
    %1099 = vdwg.mxu0
    %v1100 = vmax.f32 %v1094, 0.0
    %v1101 = vmax.f32 %v1096, 0.0
    %v1102 = vld [vmem:[%s9] sm:$0xf]
    %v1103 = vld [vmem:[%s9 + $0x4] sm:$0xf]
    %v1104 = vld [vmem:[%s9 + $0x8] sm:$0xf]
    %v1105 = vld [vmem:[%s9 + $0xc] sm:$0xf]
    %v1106 = vld [vmem:[%s9 + $0x10] sm:$0xf]
    %v1107 = vld [vmem:[%s9 + $0x14] sm:$0xf]
    %v1108 = vld [vmem:[%s9 + $0x18] sm:$0xf]
    %v1109 = vld [vmem:[%s9 + $0x1c] sm:$0xf]
    %v1110 = vld [vmem:[%s9 + $0x20] sm:$0xf]
    %v1111 = vld [vmem:[%s9 + $0x24] sm:$0xf]
    %v1112 = vld [vmem:[%s9 + $0x28] sm:$0xf]
    %v1113 = vld [vmem:[%s9 + $0x2c] sm:$0xf]
    %v1114 = vld [vmem:[%s9 + $0x30] sm:$0xf]
    %v1115 = vld [vmem:[%s9 + $0x34] sm:$0xf]
    %v1116 = vld [vmem:[%s9 + $0x38] sm:$0xf]
    %v1117 = vld [vmem:[%s9 + $0x3c] sm:$0xf]
    %v1118 = vld [vmem:[%s9 + $0x40] sm:$0xf]
    %v1119 = vld [vmem:[%s9 + $0x44] sm:$0xf]
    %v1120 = vld [vmem:[%s9 + $0x48] sm:$0xf]
    %v1121 = vld [vmem:[%s9 + $0x4c] sm:$0xf]
    %v1122 = vld [vmem:[%s9 + $0x50] sm:$0xf]
    %v1123 = vld [vmem:[%s9 + $0x54] sm:$0xf]
    %v1124 = vld [vmem:[%s9 + $0x58] sm:$0xf]
    %v1125 = vld [vmem:[%s9 + $0x5c] sm:$0xf]
    %v1126 = vld [vmem:[%s9 + $0x60] sm:$0xf]
    %v1127 = vld [vmem:[%s9 + $0x64] sm:$0xf]
    %v1128 = vld [vmem:[%s9 + $0x68] sm:$0xf]
    %v1129 = vld [vmem:[%s9 + $0x6c] sm:$0xf]
    %v1130 = vld [vmem:[%s9 + $0x70] sm:$0xf]
    %v1131 = vld [vmem:[%s9 + $0x74] sm:$0xf]
    %v1132 = vld [vmem:[%s9 + $0x78] sm:$0xf]
    %v1133 = vld [vmem:[%s9 + $0x7c] sm:$0xf]
    %v1134 = vpack.c.bf16 %v1100, %v1100
    %v1135 = vpack.c.bf16 %v1101, %v1101
    %v1136 = vld [vmem:[%s10] sm:$0x1]
    %v1138 = vlaneseq
    %v1139 = vshrl.u32 %v1138, 7
    %v1140 = vsub.s32 0, %v1139
    %v1141 = vrot.slane %v1136, %v1140
    %v1175 = vunpack.c.l.b16 %v1102
    %v1176 = vunpack.c.l.b16 %v1103
    %v1177 = vunpack.c.l.b16 %v1104
    %v1178 = vunpack.c.l.b16 %v1105
    %v1179 = vunpack.c.l.b16 %v1106
    %v1180 = vunpack.c.l.b16 %v1107
    %v1181 = vunpack.c.l.b16 %v1108
    %v1182 = vunpack.c.l.b16 %v1109
    %v1183 = vunpack.c.l.b16 %v1110
    %v1184 = vunpack.c.l.b16 %v1111
    %v1185 = vunpack.c.l.b16 %v1112
    %v1186 = vunpack.c.l.b16 %v1113
    %v1187 = vunpack.c.l.b16 %v1114
    %v1188 = vunpack.c.l.b16 %v1115
    %v1189 = vunpack.c.l.b16 %v1116
    %v1190 = vunpack.c.l.b16 %v1117
    %v1191 = vunpack.c.l.b16 %v1118
    %v1192 = vunpack.c.l.b16 %v1119
    %v1193 = vunpack.c.l.b16 %v1120
    %v1194 = vunpack.c.l.b16 %v1121
    %v1195 = vunpack.c.l.b16 %v1122
    %v1196 = vunpack.c.l.b16 %v1123
    %v1197 = vunpack.c.l.b16 %v1124
    %v1198 = vunpack.c.l.b16 %v1125
    %v1199 = vunpack.c.l.b16 %v1126
    %v1200 = vunpack.c.l.b16 %v1127
    %v1201 = vunpack.c.l.b16 %v1128
    %v1202 = vunpack.c.l.b16 %v1129
    %v1203 = vunpack.c.l.b16 %v1130
    %v1204 = vunpack.c.l.b16 %v1131
    %v1205 = vunpack.c.l.b16 %v1132
    %v1206 = vunpack.c.l.b16 %v1133
    %v1207 = vpack.c.b16 %v1176, %v1175
    %v1208 = vpack.c.b16 %v1178, %v1177
    %v1209 = vpack.c.b16 %v1180, %v1179
    %v1210 = vpack.c.b16 %v1182, %v1181
    %v1211 = vpack.c.b16 %v1184, %v1183
    %v1212 = vpack.c.b16 %v1186, %v1185
    %v1213 = vpack.c.b16 %v1188, %v1187
    %v1214 = vpack.c.b16 %v1190, %v1189
    %v1215 = vpack.c.b16 %v1192, %v1191
    %v1216 = vpack.c.b16 %v1194, %v1193
    %v1217 = vpack.c.b16 %v1196, %v1195
    %v1218 = vpack.c.b16 %v1198, %v1197
    %v1219 = vpack.c.b16 %v1200, %v1199
    %v1220 = vpack.c.b16 %v1202, %v1201
    %v1221 = vpack.c.b16 %v1204, %v1203
    %v1222 = vpack.c.b16 %v1206, %v1205
    %1239 = vmatprep.subr.bf16.mxu0 0
    %1240 = vmatpush1.bf16.msra.mxu0 %v1207
    %1241 = vmatprep.subr.bf16.mxu0 0
    %1242 = vmatpush1.bf16.msra.mxu0 %v1208
    %1243 = vmatprep.subr.bf16.mxu0 0
    %1244 = vmatpush1.bf16.msra.mxu0 %v1209
    %1245 = vmatprep.subr.bf16.mxu0 0
    %1246 = vmatpush1.bf16.msra.mxu0 %v1210
    %1247 = vmatprep.subr.bf16.mxu0 0
    %1248 = vmatpush1.bf16.msra.mxu0 %v1211
    %1249 = vmatprep.subr.bf16.mxu0 0
    %1250 = vmatpush1.bf16.msra.mxu0 %v1212
    %1251 = vmatprep.subr.bf16.mxu0 0
    %1252 = vmatpush1.bf16.msra.mxu0 %v1213
    %1253 = vmatprep.subr.bf16.mxu0 0
    %1254 = vmatpush1.bf16.msra.mxu0 %v1214
    %1255 = vmatprep.subr.bf16.mxu0 0
    %1256 = vmatpush1.bf16.msra.mxu0 %v1215
    %1257 = vmatprep.subr.bf16.mxu0 0
    %1258 = vmatpush1.bf16.msra.mxu0 %v1216
    %1259 = vmatprep.subr.bf16.mxu0 0
    %1260 = vmatpush1.bf16.msra.mxu0 %v1217
    %1261 = vmatprep.subr.bf16.mxu0 0
    %1262 = vmatpush1.bf16.msra.mxu0 %v1218
    %1263 = vmatprep.subr.bf16.mxu0 0
    %1264 = vmatpush1.bf16.msra.mxu0 %v1219
    %1265 = vmatprep.subr.bf16.mxu0 0
    %1266 = vmatpush1.bf16.msra.mxu0 %v1220
    %1267 = vmatprep.subr.bf16.mxu0 0
    %1268 = vmatpush1.bf16.msra.mxu0 %v1221
    %1269 = vmatprep.subr.bf16.mxu0 0
    %1270 = vmatpush1.bf16.msra.mxu0 %v1222
    %1271 = vmatprep.mubr.bf16.mxu0 %v1135
    %1272 = vmatmul.mubr.bf16.gmra.mrb[0].mxu0 %v1134
    %v1273 = vpop.f32.mrb[0].mxu0
    %v1274 = vadd.f32 %v1141, %v1273
    %v1275 = vpop.f32.mrb[0].mxu0
    %v1276 = vpop.f32.mrb[0].mxu0
    %v1277 = vpop.f32.mrb[0].mxu0
    %1278 = vdwg.mxu0
    %v1279 = vmul.f32 %v1274, %v1274
    %vm1280 = vcmask 259072
    %v1281 = vsel %vm1280, %v1279, 0.0
    %1282 = vadd.xlane.f32.xlu0 %v1281
    %v1283 = vpop.xlane.xlu0 %1282
    %v1284 = vmax.f32 %v1283, 1e-24
    %v1285 = vrsqrt.pop %v1284
    %v1286 = vmul.f32 %v1274, %v1285
    %v1287 = vld [vmem:[#allocation16] sm:$0x1]
    %v1289 = vlaneseq
    %v1290 = vshrl.u32 %v1289, 7
    %v1291 = vsub.s32 0, %v1290
    %v1292 = vrot.slane %v1287, %v1291
    %v1294 = vsub.f32 %v1286, %v1292
    %v1295 = vld [vmem:[#allocation18] sm:$0x1]
    %v1296 = vadd.f32 %v1295, 1e-05
    %v1297 = vrsqrt.pop %v1296
    %v1299 = vlaneseq
    %v1300 = vshrl.u32 %v1299, 7
    %v1301 = vsub.s32 0, %v1300
    %v1302 = vrot.slane %v1297, %v1301
    %v1304 = vmul.f32 %v1294, %v1302
    %v1305 = vld [vmem:[#allocation13] sm:$0x1]
    %v1307 = vlaneseq
    %v1308 = vshrl.u32 %v1307, 7
    %v1309 = vsub.s32 0, %v1308
    %v1310 = vrot.slane %v1305, %v1309
    %v1312 = vmul.f32 %v1304, %v1310
    %v1313 = vld [vmem:[#allocation15] sm:$0x1]
    %v1315 = vlaneseq
    %v1316 = vshrl.u32 %v1315, 7
    %v1317 = vsub.s32 0, %v1316
    %v1318 = vrot.slane %v1313, %v1317
    %v1320 = vadd.f32 %v1312, %v1318
    %v1321 = vld [vmem:[%s15] sm:$0xff]
    %v1322 = vld [vmem:[%s15 + $0x8] sm:$0xff]
    %v1323 = vld [vmem:[%s15 + $0x10] sm:$0xff]
    %v1324 = vld [vmem:[%s15 + $0x18] sm:$0xff]
    %v1325 = vld [vmem:[#allocation19] sm:$0x1]
    %v1327 = vlaneseq
    %v1328 = vshrl.u32 %v1327, 7
    %v1329 = vsub.s32 0, %v1328
    %v1330 = vrot.slane %v1325, %v1329
    %vm1332 = vcmask 261120
    %v1334 = vsel %vm1332, %v1320, 0
    %1336 = vmatprep.subr.mxu0 0.0
    %1337 = vmatpush1.msra.mxu0 %v1321
    %1338 = vmatprep.subr.mxu0 0.0
    %1339 = vmatpush1.msra.mxu0 %v1322
    %1340 = vmatprep.subr.mxu0 0.0
    %1341 = vmatpush1.msra.mxu0 %v1323
    %1342 = vmatprep.subr.mxu0 0.0
    %1343 = vmatpush1.msra.mxu0 %v1324
    %1344 = vmatprep.subr.mxu0 0.0
    %1345 = vmatpush1.msra.mxu0 0.0
    %1346 = vmatprep.subr.mxu0 0.0
    %1347 = vmatpush1.msra.mxu0 0.0
    %1348 = vmatprep.subr.mxu0 0.0
    %1349 = vmatpush1.msra.mxu0 0.0
    %1350 = vmatprep.subr.mxu0 0.0
    %1351 = vmatpush1.msra.mxu0 0.0
    %1352 = vmatprep.subr.mxu0 0.0
    %1353 = vmatpush1.msra.mxu0 0.0
    %1354 = vmatprep.subr.mxu0 0.0
    %1355 = vmatpush1.msra.mxu0 0.0
    %1356 = vmatprep.subr.mxu0 0.0
    %1357 = vmatpush1.msra.mxu0 0.0
    %1358 = vmatprep.subr.mxu0 0.0
    %1359 = vmatpush1.msra.mxu0 0.0
    %1360 = vmatprep.subr.mxu0 0.0
    %1361 = vmatpush1.msra.mxu0 0.0
    %1362 = vmatprep.subr.mxu0 0.0
    %1363 = vmatpush1.msra.mxu0 0.0
    %1364 = vmatprep.subr.mxu0 0.0
    %1365 = vmatpush1.msra.mxu0 0.0
    %1366 = vmatprep.subr.mxu0 0.0
    %1367 = vmatpush1.msra.mxu0 0.0
    %1368 = vmatprep.subr.mxu0 0.0
    %1369 = vmatpush1.msra.mxu0 0.0
    %1370 = vmatprep.subr.mxu0 0.0
    %1371 = vmatpush1.msra.mxu0 0.0
    %1372 = vmatprep.subr.mxu0 0.0
    %1373 = vmatpush1.msra.mxu0 0.0
    %1374 = vmatprep.subr.mxu0 0.0
    %1375 = vmatpush1.msra.mxu0 0.0
    %1376 = vmatprep.subr.mxu0 0.0
    %1377 = vmatpush1.msra.mxu0 0.0
    %1378 = vmatprep.subr.mxu0 0.0
    %1379 = vmatpush1.msra.mxu0 0.0
    %1380 = vmatprep.subr.mxu0 0.0
    %1381 = vmatpush1.msra.mxu0 0.0
    %1382 = vmatprep.subr.mxu0 0.0
    %1383 = vmatpush1.msra.mxu0 0.0
    %1384 = vmatprep.subr.mxu0 0.0
    %1385 = vmatpush1.msra.mxu0 0.0
    %1386 = vmatprep.subr.mxu0 0.0
    %1387 = vmatpush1.msra.mxu0 0.0
    %1388 = vmatprep.subr.mxu0 0.0
    %1389 = vmatpush1.msra.mxu0 0.0
    %1390 = vmatprep.subr.mxu0 0.0
    %1391 = vmatpush1.msra.mxu0 0.0
    %1392 = vmatprep.subr.mxu0 0.0
    %1393 = vmatpush1.msra.mxu0 0.0
    %1394 = vmatprep.subr.mxu0 0.0
    %1395 = vmatpush1.msra.mxu0 0.0
    %1396 = vmatprep.subr.mxu0 0.0
    %1397 = vmatpush1.msra.mxu0 0.0
    %1398 = vmatprep.subr.mxu0 0.0
    %1399 = vmatpush1.msra.mxu0 0.0
    %1400 = vmatprep.mubr.f32.mxu0 0.0
    %1401 = vmatmul.mubr.f32.gmra.mrb[0].mxu0 %v1334
    %v1402 = vpop.f32.mrb[0].mxu0
    %v1403 = vadd.f32 %v1330, %v1402
    %v1404 = vpop.f32.mrb[0].mxu0
    %1405 = vdwg.mxu0
    %vm1406 = vcmask 37888
    %1407 = vst.msk [vmem:[%s17] sm:$0x3f] %vm1406, %v1403
    // Predicated region
    $region118: #{dcc_classifier_forward.1} parent=1 // pred_check
      _
    $region119: #{dcc_classifier_forward.1} parent=1 // pred_check_branch
      %1409 = sbr.rel (0) target = $region121
    $region120: #{dcc_classifier_forward.1} parent=1 // pred_region
      _
    $region121: #{dcc_classifier_forward.1} parent=1 // pred_fallthru
      _
    // Predicated region
    $region122: #{dcc_classifier_forward.1} parent=1 // pred_check
      _
    $region123: #{dcc_classifier_forward.1} parent=1 // pred_check_branch
      %1411 = sbr.rel (0) target = $region125
    $region124: #{dcc_classifier_forward.1} parent=1 // pred_region
      _
    $region125: #{dcc_classifier_forward.1} parent=1 // pred_fallthru
      _
    %1412 = vsyncpa [#allocation3], 1
    %1413 = vsyncpa [#allocation5], 1
    %1414 = vsyncpa [#allocation8], 1
    %1415 = vsyncpa [#allocation11], 1
    %1416 = vsyncpa [#allocation14], 1
    %1417 = vsyncpa [#allocation17], 1
    %1418 = vsyncpa [#allocation20], 1

</llo_original>
